<compile_context>
chip_gen: v6e
topology: v6e:2x2x1
jax: 0.10.0
libtpu: 0.0.40
codegen_flags: <defaults>
</compile_context>

<pallas_src>
import functools

import numpy as np
import jax
import jax.numpy as jnp
from jax.experimental import pallas as pl
from jax.experimental.pallas import tpu as pltpu

BN_EPS = 1e-5


# ---------------------------------------------------------------------------
# In-kernel helpers (trace-time Python; emit only slices / concats / matmuls)
# ---------------------------------------------------------------------------
def _patch_from_lanes(x, bt, K, S, P, L_in, L_out):
    """First layer (C_in == 1): x is lane-major (bt, L_in).
    Returns im2col patch (L_out*bt, K); row = lo*bt + b, col = k."""
    need = (L_out - 1) * S + K
    pad_r = max(0, need - L_in - P)
    parts = []
    if P:
        parts.append(jnp.zeros((bt, P), jnp.float32))
    parts.append(x)
    if pad_r:
        parts.append(jnp.zeros((bt, pad_r), jnp.float32))
    xp = jnp.concatenate(parts, axis=1) if len(parts) > 1 else x
    return jnp.concatenate(
        [xp[:, lo * S: lo * S + K] for lo in range(L_out)], axis=0)


def _patch_from_stacked(a, bt, K, S, P, L_in, L_out, C):
    """a is stacked (L_in*bt, C) (row = l*bt + b).
    Returns im2col patch (L_out*bt, K*C); row = lo*bt + b, col = k*C + c."""
    need = (L_out - 1) * S + K
    pad_r = max(0, need - L_in - P)
    parts = []
    if P:
        parts.append(jnp.zeros((P * bt, C), jnp.float32))
    parts.append(a)
    if pad_r:
        parts.append(jnp.zeros((pad_r * bt, C), jnp.float32))
    ap = jnp.concatenate(parts, axis=0) if len(parts) > 1 else a
    cols = []
    for k in range(K):
        if S == 1:
            cols.append(ap[k * bt:(k + L_out) * bt, :])
        else:
            cols.append(jnp.concatenate(
                [ap[(lo * S + k) * bt:(lo * S + k + 1) * bt, :]
                 for lo in range(L_out)], axis=0))
    return cols[0] if K == 1 else jnp.concatenate(cols, axis=1)


def _dilate_stacked(a, bt, L_in, C, S):
    """Insert (S-1) zero spatial rows between rows (ConvTranspose upsampling)."""
    if S == 1 or L_in == 1:
        return a, L_in
    parts = []
    for l in range(L_in):
        parts.append(a[l * bt:(l + 1) * bt, :])
        if l < L_in - 1:
            parts.append(jnp.zeros(((S - 1) * bt, C), jnp.float32))
    return jnp.concatenate(parts, axis=0), (L_in - 1) * S + 1


def _mxu_layer(patch, w_ref, b_ref, relu):
    """One MXU matmul per layer: bf16 x bf16 -> f32 acc, +bias (+ReLU) in f32."""
    out = jnp.dot(patch.astype(jnp.bfloat16), w_ref[...],
                  preferred_element_type=jnp.float32)
    out = out + b_ref[...]
    if relu:
        out = jnp.maximum(out, 0.0)
    return out


# ---------------------------------------------------------------------------
# Fused whole-model kernel: encoder -> reparameterize -> decoder
# ---------------------------------------------------------------------------
def _vae_kernel(*refs, enc_meta, dec_meta, z_dim, input_dim):
    x_ref, eps_ref = refs[0], refs[1]
    n_enc, n_dec = len(enc_meta), len(dec_meta)
    wb = refs[2:2 + 2 * (n_enc + n_dec)]
    xhat_ref, mulv_ref = refs[-2], refs[-1]
    bt = x_ref.shape[0]

    # ---------- encoder: Conv1d (+folded BN) -> ReLU per ConvBlock ----------
    a = x_ref[...]
    for i, (K, S, P, L_in, L_out, C_in, _, relu) in enumerate(enc_meta):
        w_ref, b_ref = wb[2 * i], wb[2 * i + 1]
        if i == 0:
            patch = _patch_from_lanes(a, bt, K, S, P, L_in, L_out)
        else:
            patch = _patch_from_stacked(a, bt, K, S, P, L_in, L_out, C_in)
        a = _mxu_layer(patch, w_ref, b_ref, relu)

    # final encoder layer has L_out == 1  ->  a is (bt, 2*z_dim)
    mulv_ref[...] = a                                   # single wide store
    mu = a[:, :z_dim]
    logvar = a[:, z_dim:]
    z = mu + eps_ref[...] * jnp.exp(0.5 * logvar)       # reparameterize (train)

    # ---------- decoder: ConvTranspose1d (+folded BN) -> ReLU; last bare -----
    d = z
    off = 2 * n_enc
    for i, (K, S, P, L_in, L_out, C_in, _, relu) in enumerate(dec_meta):
        w_ref, b_ref = wb[off + 2 * i], wb[off + 2 * i + 1]
        d_dil, L_dil = _dilate_stacked(d, bt, L_in, C_in, S)
        patch = _patch_from_stacked(d_dil, bt, K, 1, K - 1 - P, L_dil, L_out,
                                    C_in)
        d = _mxu_layer(patch, w_ref, b_ref, relu)

    # d: (input_dim*bt, 1)  ->  lane-dense (bt, input_dim)
    xhat_ref[...] = jnp.concatenate(
        [d[l * bt:(l + 1) * bt, :] for l in range(input_dim)], axis=1)


# ---------------------------------------------------------------------------
# Wrapper: batch grid, bf16 weights resident in VMEM, lane-dense outputs
# ---------------------------------------------------------------------------
def _round_up(x, m):
    return (x + m - 1) // m * m


def build_vae_forward(arch):
    enc_meta, dec_meta, input_dim, z_dim = arch

    def fwd(params, x, eps):
        B = x.shape[0]
        x2 = x.reshape(B, input_dim).astype(jnp.float32)
        e2 = eps.astype(jnp.float32)

        b_pad = _round_up(B, 8)
        if b_pad > 128:
            b_pad = _round_up(B, 128)
            b_tile = 128
        else:
            b_tile = b_pad
        if b_pad != B:
            x2 = jnp.pad(x2, ((0, b_pad - B), (0, 0)))
            e2 = jnp.pad(e2, ((0, b_pad - B), (0, 0)))

        flat = [x2, e2]
        w_specs = []
        for w, b in list(params["enc"]) + list(params["dec"]):
            flat += [w, b]
            # full-array blocks with a constant index map: weights stay
            # VMEM-resident across all batch-tile grid steps (tiny after im2col)
            w_specs += [pl.BlockSpec(w.shape, lambda i: (0, 0)),
                        pl.BlockSpec(b.shape, lambda i: (0, 0))]

        kernel = functools.partial(
            _vae_kernel, enc_meta=enc_meta, dec_meta=dec_meta,
            z_dim=z_dim, input_dim=input_dim)

        xhat, mulv = pl.pallas_call(
            kernel,
            grid=(b_pad // b_tile,),
            in_specs=[pl.BlockSpec((b_tile, input_dim), lambda i: (i, 0)),
                      pl.BlockSpec((b_tile, z_dim), lambda i: (i, 0))] + w_specs,
            out_specs=(pl.BlockSpec((b_tile, input_dim), lambda i: (i, 0)),
                       pl.BlockSpec((b_tile, 2 * z_dim), lambda i: (i, 0))),
            out_shape=(jax.ShapeDtypeStruct((b_pad, input_dim), jnp.float32),
                       jax.ShapeDtypeStruct((b_pad, 2 * z_dim), jnp.float32)),
            compiler_params=pltpu.CompilerParams(
                dimension_semantics=("parallel",),
                vmem_limit_bytes=64 * 1024 * 1024),
        )(*flat)

        x_hat = xhat[:B].reshape(B, 1, input_dim)
        mu = mulv[:B, :z_dim].reshape(B, 1, z_dim)
        logvar = mulv[:B, z_dim:].reshape(B, 1, z_dim)
        return x_hat, mu, logvar

    return jax.jit(fwd)


# ---------------------------------------------------------------------------
# Host-side lowering: conv / tconv (+ folded BN, bias) -> im2col matrices
# ---------------------------------------------------------------------------
def _bn_fold(c):
    # eval-mode BatchNorm1d with identity-initialised gamma/beta/running stats
    gamma = np.ones(c, np.float32)
    beta = np.zeros(c, np.float32)
    mean = np.zeros(c, np.float32)
    var = np.ones(c, np.float32)
    scale = gamma / np.sqrt(var + BN_EPS)
    shift = beta - mean * scale
    return scale, shift


def _conv_im2col(w, b, scale, shift):
    # torch Conv1d weight (C_out, C_in, K) -> (K*C_in, C_out); row = k*C_in + ci
    C_out, C_in, K = w.shape
    Wc = (w * scale[:, None, None]).transpose(2, 1, 0).reshape(K * C_in, C_out)
    bc = b * scale + shift
    return Wc.astype(np.float32), bc.astype(np.float32)


def _tconv_im2col(w, b, scale, shift):
    # torch ConvTranspose1d weight (C_in, C_out, K).  Equivalent stride-1 conv
    # on the S-dilated input uses the flipped kernel: wc[k',ci,co]=w[ci,co,K-1-k']
    C_in, C_out, K = w.shape
    wf = w[:, :, ::-1]
    Wc = (wf * scale[None, :, None]).transpose(2, 0, 1).reshape(K * C_in, C_out)
    bc = b * scale + shift
    return Wc.astype(np.float32), bc.astype(np.float32)


def _get_arch_n(input_dim):
    # get_last_half(input_dim): number of exact factor-2 halvings
    n_half, rem = 0, input_dim
    while rem % 2 == 0 and rem > 1:
        rem //= 2
        n_half += 1
    n = min(int(np.log(input_dim / 1.0) / np.log(2)), n_half)  # as in reference
    final_kernel = int(input_dim / 2 ** n)
    return n, final_kernel


def _rand(key, shape, scl=0.1):
    return np.asarray(scl * jax.random.normal(key, shape, jnp.float32))


def init_params(key, input_dim, z_dim, kernel=4, stride=2, padding=1):
    n, final_kernel = _get_arch_n(input_dim)

    enc_cfg = ([(1, z_dim, kernel, stride, padding)]
               + [(z_dim, z_dim, kernel, stride, padding)] * (n - 1)
               + [(z_dim, 2 * z_dim, final_kernel, 1, 0)])
    dec_cfg = ([(z_dim, z_dim, final_kernel, 1, 0, True)]
               + [(z_dim, z_dim, kernel, stride, padding, True)] * (n - 1)
               + [(z_dim, 1, kernel, stride, padding, False)])   # gaussian: bare

    lyr = 0
    enc_params, enc_meta = [], []
    L = input_dim
    for (c_in, c_out, K, S, P) in enc_cfg:
        w = _rand(jax.random.fold_in(key, lyr), (c_out, c_in, K)); lyr += 1
        b = _rand(jax.random.fold_in(key, lyr), (c_out,), 0.05); lyr += 1
        scale, shift = _bn_fold(c_out)
        Wc, bc = _conv_im2col(w, b, scale, shift)
        L_out = (L + 2 * P - K) // S + 1
        enc_meta.append((K, S, P, L, L_out, c_in, c_out, True))
        enc_params.append((jnp.asarray(Wc, jnp.bfloat16),
                           jnp.asarray(bc.reshape(1, -1), jnp.float32)))
        L = L_out
    # mu/logvar lane split in-kernel is only valid when the final length is 1
    assert L == 1, ("final encoder spatial length must be 1", L)

    dec_params, dec_meta = [], []
    L = 1
    for (c_in, c_out, K, S, P, has_bn_relu) in dec_cfg:
        w = _rand(jax.random.fold_in(key, lyr), (c_in, c_out, K)); lyr += 1
        b = _rand(jax.random.fold_in(key, lyr), (c_out,), 0.05); lyr += 1
        if has_bn_relu:
            scale, shift = _bn_fold(c_out)
        else:
            scale = np.ones(c_out, np.float32)
            shift = np.zeros(c_out, np.float32)
        Wc, bc = _tconv_im2col(w, b, scale, shift)
        L_out = (L - 1) * S - 2 * P + K
        dec_meta.append((K, S, P, L, L_out, c_in, c_out, has_bn_relu))
        dec_params.append((jnp.asarray(Wc, jnp.bfloat16),
                           jnp.asarray(bc.reshape(1, -1), jnp.float32)))
        L = L_out
    assert L == input_dim, (L, input_dim)

    params = {"enc": enc_params, "dec": dec_params}
    arch = (tuple(enc_meta), tuple(dec_meta), input_dim, z_dim)
    return params, arch


# ---------------------------------------------------------------------------
if __name__ == "__main__":
    B, INPUT_DIM, Z_DIM = 2, 16, 8

    x = jax.random.normal(jax.random.PRNGKey(0), (B, 1, INPUT_DIM), jnp.float32)
    eps = jax.random.normal(jax.random.PRNGKey(1), (B, Z_DIM), jnp.float32)
    params, arch = init_params(jax.random.PRNGKey(42), INPUT_DIM, Z_DIM)

    fwd = build_vae_forward(arch)
    x_hat, mu, logvar = fwd(params, x, eps)
    jax.block_until_ready((x_hat, mu, logvar))

    assert x_hat.shape == (B, 1, INPUT_DIM), x_hat.shape
    assert mu.shape == (B, 1, Z_DIM), mu.shape
    assert logvar.shape == (B, 1, Z_DIM), logvar.shape
    assert bool(jnp.isfinite(x_hat).all())
    assert bool(jnp.isfinite(mu).all()) and bool(jnp.isfinite(logvar).all())
    print("KERNEL_OK")
</pallas_src>

<mosaic_0001>
module attributes {stable_mosaic.version = 11 : i64} {
  func.func @_vae_kernel(%arg0: i32, %arg1: memref<8x16xf32, #tpu.memory_space<vmem>>, %arg2: memref<8x8xf32, #tpu.memory_space<vmem>>, %arg3: memref<4x8xbf16, #tpu.memory_space<vmem>>, %arg4: memref<1x8xf32, #tpu.memory_space<vmem>>, %arg5: memref<32x8xbf16, #tpu.memory_space<vmem>>, %arg6: memref<1x8xf32, #tpu.memory_space<vmem>>, %arg7: memref<32x8xbf16, #tpu.memory_space<vmem>>, %arg8: memref<1x8xf32, #tpu.memory_space<vmem>>, %arg9: memref<32x8xbf16, #tpu.memory_space<vmem>>, %arg10: memref<1x8xf32, #tpu.memory_space<vmem>>, %arg11: memref<8x16xbf16, #tpu.memory_space<vmem>>, %arg12: memref<1x16xf32, #tpu.memory_space<vmem>>, %arg13: memref<8x8xbf16, #tpu.memory_space<vmem>>, %arg14: memref<1x8xf32, #tpu.memory_space<vmem>>, %arg15: memref<32x8xbf16, #tpu.memory_space<vmem>>, %arg16: memref<1x8xf32, #tpu.memory_space<vmem>>, %arg17: memref<32x8xbf16, #tpu.memory_space<vmem>>, %arg18: memref<1x8xf32, #tpu.memory_space<vmem>>, %arg19: memref<32x8xbf16, #tpu.memory_space<vmem>>, %arg20: memref<1x8xf32, #tpu.memory_space<vmem>>, %arg21: memref<32x1xbf16, #tpu.memory_space<vmem>>, %arg22: memref<1x1xf32, #tpu.memory_space<vmem>>, %arg23: memref<8x16xf32, #tpu.memory_space<vmem>>, %arg24: memref<8x16xf32, #tpu.memory_space<vmem>>) attributes {dimension_semantics = [#tpu.dimension_semantics<parallel>], iteration_bounds = array<i64: 1>, scalar_prefetch = 0 : i64, scratch_operands = 0 : i64, tpu.core_type = #tpu.core_type<tc>, window_params = [{transform_indices = @transform_0, window_bounds = array<i64: 8, 16>}, {transform_indices = @transform_1, window_bounds = array<i64: 8, 8>}, {pipeline_mode = #tpu.pipeline_mode<synchronous>, transform_indices = @transform_2, window_bounds = array<i64: 4, 8>}, {pipeline_mode = #tpu.pipeline_mode<synchronous>, transform_indices = @transform_3, window_bounds = array<i64: 1, 8>}, {pipeline_mode = #tpu.pipeline_mode<synchronous>, transform_indices = @transform_4, window_bounds = array<i64: 32, 8>}, {pipeline_mode = #tpu.pipeline_mode<synchronous>, transform_indices = @transform_5, window_bounds = array<i64: 1, 8>}, {pipeline_mode = #tpu.pipeline_mode<synchronous>, transform_indices = @transform_6, window_bounds = array<i64: 32, 8>}, {pipeline_mode = #tpu.pipeline_mode<synchronous>, transform_indices = @transform_7, window_bounds = array<i64: 1, 8>}, {pipeline_mode = #tpu.pipeline_mode<synchronous>, transform_indices = @transform_8, window_bounds = array<i64: 32, 8>}, {pipeline_mode = #tpu.pipeline_mode<synchronous>, transform_indices = @transform_9, window_bounds = array<i64: 1, 8>}, {pipeline_mode = #tpu.pipeline_mode<synchronous>, transform_indices = @transform_10, window_bounds = array<i64: 8, 16>}, {pipeline_mode = #tpu.pipeline_mode<synchronous>, transform_indices = @transform_11, window_bounds = array<i64: 1, 16>}, {pipeline_mode = #tpu.pipeline_mode<synchronous>, transform_indices = @transform_12, window_bounds = array<i64: 8, 8>}, {pipeline_mode = #tpu.pipeline_mode<synchronous>, transform_indices = @transform_13, window_bounds = array<i64: 1, 8>}, {pipeline_mode = #tpu.pipeline_mode<synchronous>, transform_indices = @transform_14, window_bounds = array<i64: 32, 8>}, {pipeline_mode = #tpu.pipeline_mode<synchronous>, transform_indices = @transform_15, window_bounds = array<i64: 1, 8>}, {pipeline_mode = #tpu.pipeline_mode<synchronous>, transform_indices = @transform_16, window_bounds = array<i64: 32, 8>}, {pipeline_mode = #tpu.pipeline_mode<synchronous>, transform_indices = @transform_17, window_bounds = array<i64: 1, 8>}, {pipeline_mode = #tpu.pipeline_mode<synchronous>, transform_indices = @transform_18, window_bounds = array<i64: 32, 8>}, {pipeline_mode = #tpu.pipeline_mode<synchronous>, transform_indices = @transform_19, window_bounds = array<i64: 1, 8>}, {pipeline_mode = #tpu.pipeline_mode<synchronous>, transform_indices = @transform_20, window_bounds = array<i64: 32, 1>}, {pipeline_mode = #tpu.pipeline_mode<synchronous>, transform_indices = @transform_21, window_bounds = array<i64: 1, 1>}, {transform_indices = @transform_22, window_bounds = array<i64: 8, 16>}, {transform_indices = @transform_23, window_bounds = array<i64: 8, 16>}]} {
    %c0 = arith.constant 0 : index
    %c0_0 = arith.constant 0 : index
    %0 = vector.load %arg1[%c0, %c0_0] : memref<8x16xf32, #tpu.memory_space<vmem>>, vector<8x16xf32>
    %cst = arith.constant 0.000000e+00 : f32
    %1 = vector.broadcast %cst : f32 to vector<8x1xf32>
    %cst_1 = arith.constant 0.000000e+00 : f32
    %2 = vector.broadcast %cst_1 : f32 to vector<8x1xf32>
    %3 = tpu.concatenate %1, %0, %2 in 1 : vector<8x1xf32>, vector<8x16xf32>, vector<8x1xf32> -> vector<8x18xf32>
    %4 = vector.extract_strided_slice %3 {offsets = [0, 0], sizes = [8, 4], strides = [1, 1]} : vector<8x18xf32> to vector<8x4xf32>
    %5 = vector.extract_strided_slice %3 {offsets = [0, 2], sizes = [8, 4], strides = [1, 1]} : vector<8x18xf32> to vector<8x4xf32>
    %6 = vector.extract_strided_slice %3 {offsets = [0, 4], sizes = [8, 4], strides = [1, 1]} : vector<8x18xf32> to vector<8x4xf32>
    %7 = vector.extract_strided_slice %3 {offsets = [0, 6], sizes = [8, 4], strides = [1, 1]} : vector<8x18xf32> to vector<8x4xf32>
    %8 = vector.extract_strided_slice %3 {offsets = [0, 8], sizes = [8, 4], strides = [1, 1]} : vector<8x18xf32> to vector<8x4xf32>
    %9 = vector.extract_strided_slice %3 {offsets = [0, 10], sizes = [8, 4], strides = [1, 1]} : vector<8x18xf32> to vector<8x4xf32>
    %10 = vector.extract_strided_slice %3 {offsets = [0, 12], sizes = [8, 4], strides = [1, 1]} : vector<8x18xf32> to vector<8x4xf32>
    %11 = vector.extract_strided_slice %3 {offsets = [0, 14], sizes = [8, 4], strides = [1, 1]} : vector<8x18xf32> to vector<8x4xf32>
    %12 = tpu.concatenate %4, %5, %6, %7, %8, %9, %10, %11 in 0 : vector<8x4xf32>, vector<8x4xf32>, vector<8x4xf32>, vector<8x4xf32>, vector<8x4xf32>, vector<8x4xf32>, vector<8x4xf32>, vector<8x4xf32> -> vector<64x4xf32>
    %13 = arith.truncf %12 : vector<64x4xf32> to vector<64x4xbf16>
    %c0_2 = arith.constant 0 : index
    %c0_3 = arith.constant 0 : index
    %14 = vector.load %arg3[%c0_2, %c0_3] : memref<4x8xbf16, #tpu.memory_space<vmem>>, vector<4x8xbf16>
    %cst_4 = arith.constant dense<0.000000e+00> : vector<64x8xf32>
    %15 = tpu.matmul %13, %14, %cst_4 {dimension_numbers = #tpu.dot_dimension_numbers<[1], [0], [0], [1], [0, 0, 1, 1], [], []>} : vector<64x4xbf16>, vector<4x8xbf16>, vector<64x8xf32> -> vector<64x8xf32>
    %c0_5 = arith.constant 0 : index
    %c0_6 = arith.constant 0 : index
    %16 = vector.load %arg4[%c0_5, %c0_6] : memref<1x8xf32, #tpu.memory_space<vmem>>, vector<1x8xf32>
    %17 = vector.broadcast %16 : vector<1x8xf32> to vector<64x8xf32>
    %18 = arith.addf %15, %17 : vector<64x8xf32>
    %cst_7 = arith.constant 0.000000e+00 : f32
    %19 = vector.broadcast %cst_7 : f32 to vector<64x8xf32>
    %20 = arith.maximumf %18, %19 : vector<64x8xf32>
    %cst_8 = arith.constant 0.000000e+00 : f32
    %21 = vector.broadcast %cst_8 : f32 to vector<8x8xf32>
    %cst_9 = arith.constant 0.000000e+00 : f32
    %22 = vector.broadcast %cst_9 : f32 to vector<8x8xf32>
    %23 = tpu.concatenate %21, %20, %22 in 0 : vector<8x8xf32>, vector<64x8xf32>, vector<8x8xf32> -> vector<80x8xf32>
    %24 = vector.extract_strided_slice %23 {offsets = [0, 0], sizes = [8, 8], strides = [1, 1]} : vector<80x8xf32> to vector<8x8xf32>
    %25 = vector.extract_strided_slice %23 {offsets = [16, 0], sizes = [8, 8], strides = [1, 1]} : vector<80x8xf32> to vector<8x8xf32>
    %26 = vector.extract_strided_slice %23 {offsets = [32, 0], sizes = [8, 8], strides = [1, 1]} : vector<80x8xf32> to vector<8x8xf32>
    %27 = vector.extract_strided_slice %23 {offsets = [48, 0], sizes = [8, 8], strides = [1, 1]} : vector<80x8xf32> to vector<8x8xf32>
    %28 = tpu.concatenate %24, %25, %26, %27 in 0 : vector<8x8xf32>, vector<8x8xf32>, vector<8x8xf32>, vector<8x8xf32> -> vector<32x8xf32>
    %29 = vector.extract_strided_slice %23 {offsets = [8, 0], sizes = [8, 8], strides = [1, 1]} : vector<80x8xf32> to vector<8x8xf32>
    %30 = vector.extract_strided_slice %23 {offsets = [24, 0], sizes = [8, 8], strides = [1, 1]} : vector<80x8xf32> to vector<8x8xf32>
    %31 = vector.extract_strided_slice %23 {offsets = [40, 0], sizes = [8, 8], strides = [1, 1]} : vector<80x8xf32> to vector<8x8xf32>
    %32 = vector.extract_strided_slice %23 {offsets = [56, 0], sizes = [8, 8], strides = [1, 1]} : vector<80x8xf32> to vector<8x8xf32>
    %33 = tpu.concatenate %29, %30, %31, %32 in 0 : vector<8x8xf32>, vector<8x8xf32>, vector<8x8xf32>, vector<8x8xf32> -> vector<32x8xf32>
    %34 = vector.extract_strided_slice %23 {offsets = [16, 0], sizes = [8, 8], strides = [1, 1]} : vector<80x8xf32> to vector<8x8xf32>
    %35 = vector.extract_strided_slice %23 {offsets = [32, 0], sizes = [8, 8], strides = [1, 1]} : vector<80x8xf32> to vector<8x8xf32>
    %36 = vector.extract_strided_slice %23 {offsets = [48, 0], sizes = [8, 8], strides = [1, 1]} : vector<80x8xf32> to vector<8x8xf32>
    %37 = vector.extract_strided_slice %23 {offsets = [64, 0], sizes = [8, 8], strides = [1, 1]} : vector<80x8xf32> to vector<8x8xf32>
    %38 = tpu.concatenate %34, %35, %36, %37 in 0 : vector<8x8xf32>, vector<8x8xf32>, vector<8x8xf32>, vector<8x8xf32> -> vector<32x8xf32>
    %39 = vector.extract_strided_slice %23 {offsets = [24, 0], sizes = [8, 8], strides = [1, 1]} : vector<80x8xf32> to vector<8x8xf32>
    %40 = vector.extract_strided_slice %23 {offsets = [40, 0], sizes = [8, 8], strides = [1, 1]} : vector<80x8xf32> to vector<8x8xf32>
    %41 = vector.extract_strided_slice %23 {offsets = [56, 0], sizes = [8, 8], strides = [1, 1]} : vector<80x8xf32> to vector<8x8xf32>
    %42 = vector.extract_strided_slice %23 {offsets = [72, 0], sizes = [8, 8], strides = [1, 1]} : vector<80x8xf32> to vector<8x8xf32>
    %43 = tpu.concatenate %39, %40, %41, %42 in 0 : vector<8x8xf32>, vector<8x8xf32>, vector<8x8xf32>, vector<8x8xf32> -> vector<32x8xf32>
    %44 = tpu.concatenate %28, %33, %38, %43 in 1 : vector<32x8xf32>, vector<32x8xf32>, vector<32x8xf32>, vector<32x8xf32> -> vector<32x32xf32>
    %45 = arith.truncf %44 : vector<32x32xf32> to vector<32x32xbf16>
    %c0_10 = arith.constant 0 : index
    %c0_11 = arith.constant 0 : index
    %46 = vector.load %arg5[%c0_10, %c0_11] : memref<32x8xbf16, #tpu.memory_space<vmem>>, vector<32x8xbf16>
    %cst_12 = arith.constant dense<0.000000e+00> : vector<32x8xf32>
    %47 = tpu.matmul %45, %46, %cst_12 {dimension_numbers = #tpu.dot_dimension_numbers<[1], [0], [0], [1], [0, 0, 1, 1], [], []>} : vector<32x32xbf16>, vector<32x8xbf16>, vector<32x8xf32> -> vector<32x8xf32>
    %c0_13 = arith.constant 0 : index
    %c0_14 = arith.constant 0 : index
    %48 = vector.load %arg6[%c0_13, %c0_14] : memref<1x8xf32, #tpu.memory_space<vmem>>, vector<1x8xf32>
    %49 = vector.broadcast %48 : vector<1x8xf32> to vector<32x8xf32>
    %50 = arith.addf %47, %49 : vector<32x8xf32>
    %cst_15 = arith.constant 0.000000e+00 : f32
    %51 = vector.broadcast %cst_15 : f32 to vector<32x8xf32>
    %52 = arith.maximumf %50, %51 : vector<32x8xf32>
    %cst_16 = arith.constant 0.000000e+00 : f32
    %53 = vector.broadcast %cst_16 : f32 to vector<8x8xf32>
    %cst_17 = arith.constant 0.000000e+00 : f32
    %54 = vector.broadcast %cst_17 : f32 to vector<8x8xf32>
    %55 = tpu.concatenate %53, %52, %54 in 0 : vector<8x8xf32>, vector<32x8xf32>, vector<8x8xf32> -> vector<48x8xf32>
    %56 = vector.extract_strided_slice %55 {offsets = [0, 0], sizes = [8, 8], strides = [1, 1]} : vector<48x8xf32> to vector<8x8xf32>
    %57 = vector.extract_strided_slice %55 {offsets = [16, 0], sizes = [8, 8], strides = [1, 1]} : vector<48x8xf32> to vector<8x8xf32>
    %58 = tpu.concatenate %56, %57 in 0 : vector<8x8xf32>, vector<8x8xf32> -> vector<16x8xf32>
    %59 = vector.extract_strided_slice %55 {offsets = [8, 0], sizes = [8, 8], strides = [1, 1]} : vector<48x8xf32> to vector<8x8xf32>
    %60 = vector.extract_strided_slice %55 {offsets = [24, 0], sizes = [8, 8], strides = [1, 1]} : vector<48x8xf32> to vector<8x8xf32>
    %61 = tpu.concatenate %59, %60 in 0 : vector<8x8xf32>, vector<8x8xf32> -> vector<16x8xf32>
    %62 = vector.extract_strided_slice %55 {offsets = [16, 0], sizes = [8, 8], strides = [1, 1]} : vector<48x8xf32> to vector<8x8xf32>
    %63 = vector.extract_strided_slice %55 {offsets = [32, 0], sizes = [8, 8], strides = [1, 1]} : vector<48x8xf32> to vector<8x8xf32>
    %64 = tpu.concatenate %62, %63 in 0 : vector<8x8xf32>, vector<8x8xf32> -> vector<16x8xf32>
    %65 = vector.extract_strided_slice %55 {offsets = [24, 0], sizes = [8, 8], strides = [1, 1]} : vector<48x8xf32> to vector<8x8xf32>
    %66 = vector.extract_strided_slice %55 {offsets = [40, 0], sizes = [8, 8], strides = [1, 1]} : vector<48x8xf32> to vector<8x8xf32>
    %67 = tpu.concatenate %65, %66 in 0 : vector<8x8xf32>, vector<8x8xf32> -> vector<16x8xf32>
    %68 = tpu.concatenate %58, %61, %64, %67 in 1 : vector<16x8xf32>, vector<16x8xf32>, vector<16x8xf32>, vector<16x8xf32> -> vector<16x32xf32>
    %69 = arith.truncf %68 : vector<16x32xf32> to vector<16x32xbf16>
    %c0_18 = arith.constant 0 : index
    %c0_19 = arith.constant 0 : index
    %70 = vector.load %arg7[%c0_18, %c0_19] : memref<32x8xbf16, #tpu.memory_space<vmem>>, vector<32x8xbf16>
    %cst_20 = arith.constant dense<0.000000e+00> : vector<16x8xf32>
    %71 = tpu.matmul %69, %70, %cst_20 {dimension_numbers = #tpu.dot_dimension_numbers<[1], [0], [0], [1], [0, 0, 1, 1], [], []>} : vector<16x32xbf16>, vector<32x8xbf16>, vector<16x8xf32> -> vector<16x8xf32>
    %c0_21 = arith.constant 0 : index
    %c0_22 = arith.constant 0 : index
    %72 = vector.load %arg8[%c0_21, %c0_22] : memref<1x8xf32, #tpu.memory_space<vmem>>, vector<1x8xf32>
    %73 = vector.broadcast %72 : vector<1x8xf32> to vector<16x8xf32>
    %74 = arith.addf %71, %73 : vector<16x8xf32>
    %cst_23 = arith.constant 0.000000e+00 : f32
    %75 = vector.broadcast %cst_23 : f32 to vector<16x8xf32>
    %76 = arith.maximumf %74, %75 : vector<16x8xf32>
    %cst_24 = arith.constant 0.000000e+00 : f32
    %77 = vector.broadcast %cst_24 : f32 to vector<8x8xf32>
    %cst_25 = arith.constant 0.000000e+00 : f32
    %78 = vector.broadcast %cst_25 : f32 to vector<8x8xf32>
    %79 = tpu.concatenate %77, %76, %78 in 0 : vector<8x8xf32>, vector<16x8xf32>, vector<8x8xf32> -> vector<32x8xf32>
    %80 = vector.extract_strided_slice %79 {offsets = [0, 0], sizes = [8, 8], strides = [1, 1]} : vector<32x8xf32> to vector<8x8xf32>
    %81 = vector.extract_strided_slice %79 {offsets = [8, 0], sizes = [8, 8], strides = [1, 1]} : vector<32x8xf32> to vector<8x8xf32>
    %82 = vector.extract_strided_slice %79 {offsets = [16, 0], sizes = [8, 8], strides = [1, 1]} : vector<32x8xf32> to vector<8x8xf32>
    %83 = vector.extract_strided_slice %79 {offsets = [24, 0], sizes = [8, 8], strides = [1, 1]} : vector<32x8xf32> to vector<8x8xf32>
    %84 = tpu.concatenate %80, %81, %82, %83 in 1 : vector<8x8xf32>, vector<8x8xf32>, vector<8x8xf32>, vector<8x8xf32> -> vector<8x32xf32>
    %85 = arith.truncf %84 : vector<8x32xf32> to vector<8x32xbf16>
    %c0_26 = arith.constant 0 : index
    %c0_27 = arith.constant 0 : index
    %86 = vector.load %arg9[%c0_26, %c0_27] : memref<32x8xbf16, #tpu.memory_space<vmem>>, vector<32x8xbf16>
    %cst_28 = arith.constant dense<0.000000e+00> : vector<8x8xf32>
    %87 = tpu.matmul %85, %86, %cst_28 {dimension_numbers = #tpu.dot_dimension_numbers<[1], [0], [0], [1], [0, 0, 1, 1], [], []>} : vector<8x32xbf16>, vector<32x8xbf16>, vector<8x8xf32> -> vector<8x8xf32>
    %c0_29 = arith.constant 0 : index
    %c0_30 = arith.constant 0 : index
    %88 = vector.load %arg10[%c0_29, %c0_30] : memref<1x8xf32, #tpu.memory_space<vmem>>, vector<1x8xf32>
    %89 = vector.broadcast %88 : vector<1x8xf32> to vector<8x8xf32>
    %90 = arith.addf %87, %89 : vector<8x8xf32>
    %cst_31 = arith.constant 0.000000e+00 : f32
    %91 = vector.broadcast %cst_31 : f32 to vector<8x8xf32>
    %92 = arith.maximumf %90, %91 : vector<8x8xf32>
    %93 = arith.truncf %92 : vector<8x8xf32> to vector<8x8xbf16>
    %c0_32 = arith.constant 0 : index
    %c0_33 = arith.constant 0 : index
    %94 = vector.load %arg11[%c0_32, %c0_33] : memref<8x16xbf16, #tpu.memory_space<vmem>>, vector<8x16xbf16>
    %cst_34 = arith.constant dense<0.000000e+00> : vector<8x16xf32>
    %95 = tpu.matmul %93, %94, %cst_34 {dimension_numbers = #tpu.dot_dimension_numbers<[1], [0], [0], [1], [0, 0, 1, 1], [], []>} : vector<8x8xbf16>, vector<8x16xbf16>, vector<8x16xf32> -> vector<8x16xf32>
    %c0_35 = arith.constant 0 : index
    %c0_36 = arith.constant 0 : index
    %96 = vector.load %arg12[%c0_35, %c0_36] : memref<1x16xf32, #tpu.memory_space<vmem>>, vector<1x16xf32>
    %97 = vector.broadcast %96 : vector<1x16xf32> to vector<8x16xf32>
    %98 = arith.addf %95, %97 : vector<8x16xf32>
    %cst_37 = arith.constant 0.000000e+00 : f32
    %99 = vector.broadcast %cst_37 : f32 to vector<8x16xf32>
    %100 = arith.maximumf %98, %99 : vector<8x16xf32>
    %c0_38 = arith.constant 0 : index
    %c0_39 = arith.constant 0 : index
    %101 = vector.load %arg24[%c0_38, %c0_39] : memref<8x16xf32, #tpu.memory_space<vmem>>, vector<8x16xf32>
    tpu.vector_store %arg24[%c0_38, %c0_39], %100 {strides = array<i32>} : memref<8x16xf32, #tpu.memory_space<vmem>>, vector<8x16xf32>,
    %102 = vector.extract_strided_slice %100 {offsets = [0, 0], sizes = [8, 8], strides = [1, 1]} : vector<8x16xf32> to vector<8x8xf32>
    %103 = vector.extract_strided_slice %100 {offsets = [0, 8], sizes = [8, 8], strides = [1, 1]} : vector<8x16xf32> to vector<8x8xf32>
    %c0_40 = arith.constant 0 : index
    %c0_41 = arith.constant 0 : index
    %104 = vector.load %arg2[%c0_40, %c0_41] : memref<8x8xf32, #tpu.memory_space<vmem>>, vector<8x8xf32>
    %cst_42 = arith.constant 5.000000e-01 : f32
    %105 = vector.broadcast %cst_42 : f32 to vector<8x8xf32>
    %106 = arith.mulf %105, %103 : vector<8x8xf32>
    %107 = math.exp %106 : vector<8x8xf32>
    %108 = arith.mulf %104, %107 : vector<8x8xf32>
    %109 = arith.addf %102, %108 : vector<8x8xf32>
    %110 = arith.truncf %109 : vector<8x8xf32> to vector<8x8xbf16>
    %c0_43 = arith.constant 0 : index
    %c0_44 = arith.constant 0 : index
    %111 = vector.load %arg13[%c0_43, %c0_44] : memref<8x8xbf16, #tpu.memory_space<vmem>>, vector<8x8xbf16>
    %cst_45 = arith.constant dense<0.000000e+00> : vector<8x8xf32>
    %112 = tpu.matmul %110, %111, %cst_45 {dimension_numbers = #tpu.dot_dimension_numbers<[1], [0], [0], [1], [0, 0, 1, 1], [], []>} : vector<8x8xbf16>, vector<8x8xbf16>, vector<8x8xf32> -> vector<8x8xf32>
    %c0_46 = arith.constant 0 : index
    %c0_47 = arith.constant 0 : index
    %113 = vector.load %arg14[%c0_46, %c0_47] : memref<1x8xf32, #tpu.memory_space<vmem>>, vector<1x8xf32>
    %114 = vector.broadcast %113 : vector<1x8xf32> to vector<8x8xf32>
    %115 = arith.addf %112, %114 : vector<8x8xf32>
    %cst_48 = arith.constant 0.000000e+00 : f32
    %116 = vector.broadcast %cst_48 : f32 to vector<8x8xf32>
    %117 = arith.maximumf %115, %116 : vector<8x8xf32>
    %cst_49 = arith.constant 0.000000e+00 : f32
    %118 = vector.broadcast %cst_49 : f32 to vector<16x8xf32>
    %cst_50 = arith.constant 0.000000e+00 : f32
    %119 = vector.broadcast %cst_50 : f32 to vector<16x8xf32>
    %120 = tpu.concatenate %118, %117, %119 in 0 : vector<16x8xf32>, vector<8x8xf32>, vector<16x8xf32> -> vector<40x8xf32>
    %121 = vector.extract_strided_slice %120 {offsets = [0, 0], sizes = [16, 8], strides = [1, 1]} : vector<40x8xf32> to vector<16x8xf32>
    %122 = vector.extract_strided_slice %120 {offsets = [8, 0], sizes = [16, 8], strides = [1, 1]} : vector<40x8xf32> to vector<16x8xf32>
    %123 = vector.extract_strided_slice %120 {offsets = [16, 0], sizes = [16, 8], strides = [1, 1]} : vector<40x8xf32> to vector<16x8xf32>
    %124 = vector.extract_strided_slice %120 {offsets = [24, 0], sizes = [16, 8], strides = [1, 1]} : vector<40x8xf32> to vector<16x8xf32>
    %125 = tpu.concatenate %121, %122, %123, %124 in 1 : vector<16x8xf32>, vector<16x8xf32>, vector<16x8xf32>, vector<16x8xf32> -> vector<16x32xf32>
    %126 = arith.truncf %125 : vector<16x32xf32> to vector<16x32xbf16>
    %c0_51 = arith.constant 0 : index
    %c0_52 = arith.constant 0 : index
    %127 = vector.load %arg15[%c0_51, %c0_52] : memref<32x8xbf16, #tpu.memory_space<vmem>>, vector<32x8xbf16>
    %cst_53 = arith.constant dense<0.000000e+00> : vector<16x8xf32>
    %128 = tpu.matmul %126, %127, %cst_53 {dimension_numbers = #tpu.dot_dimension_numbers<[1], [0], [0], [1], [0, 0, 1, 1], [], []>} : vector<16x32xbf16>, vector<32x8xbf16>, vector<16x8xf32> -> vector<16x8xf32>
    %c0_54 = arith.constant 0 : index
    %c0_55 = arith.constant 0 : index
    %129 = vector.load %arg16[%c0_54, %c0_55] : memref<1x8xf32, #tpu.memory_space<vmem>>, vector<1x8xf32>
    %130 = vector.broadcast %129 : vector<1x8xf32> to vector<16x8xf32>
    %131 = arith.addf %128, %130 : vector<16x8xf32>
    %cst_56 = arith.constant 0.000000e+00 : f32
    %132 = vector.broadcast %cst_56 : f32 to vector<16x8xf32>
    %133 = arith.maximumf %131, %132 : vector<16x8xf32>
    %134 = vector.extract_strided_slice %133 {offsets = [0, 0], sizes = [8, 8], strides = [1, 1]} : vector<16x8xf32> to vector<8x8xf32>
    %cst_57 = arith.constant 0.000000e+00 : f32
    %135 = vector.broadcast %cst_57 : f32 to vector<8x8xf32>
    %136 = vector.extract_strided_slice %133 {offsets = [8, 0], sizes = [8, 8], strides = [1, 1]} : vector<16x8xf32> to vector<8x8xf32>
    %137 = tpu.concatenate %134, %135, %136 in 0 : vector<8x8xf32>, vector<8x8xf32>, vector<8x8xf32> -> vector<24x8xf32>
    %cst_58 = arith.constant 0.000000e+00 : f32
    %138 = vector.broadcast %cst_58 : f32 to vector<16x8xf32>
    %cst_59 = arith.constant 0.000000e+00 : f32
    %139 = vector.broadcast %cst_59 : f32 to vector<16x8xf32>
    %140 = tpu.concatenate %138, %137, %139 in 0 : vector<16x8xf32>, vector<24x8xf32>, vector<16x8xf32> -> vector<56x8xf32>
    %141 = vector.extract_strided_slice %140 {offsets = [0, 0], sizes = [32, 8], strides = [1, 1]} : vector<56x8xf32> to vector<32x8xf32>
    %142 = vector.extract_strided_slice %140 {offsets = [8, 0], sizes = [32, 8], strides = [1, 1]} : vector<56x8xf32> to vector<32x8xf32>
    %143 = vector.extract_strided_slice %140 {offsets = [16, 0], sizes = [32, 8], strides = [1, 1]} : vector<56x8xf32> to vector<32x8xf32>
    %144 = vector.extract_strided_slice %140 {offsets = [24, 0], sizes = [32, 8], strides = [1, 1]} : vector<56x8xf32> to vector<32x8xf32>
    %145 = tpu.concatenate %141, %142, %143, %144 in 1 : vector<32x8xf32>, vector<32x8xf32>, vector<32x8xf32>, vector<32x8xf32> -> vector<32x32xf32>
    %146 = arith.truncf %145 : vector<32x32xf32> to vector<32x32xbf16>
    %c0_60 = arith.constant 0 : index
    %c0_61 = arith.constant 0 : index
    %147 = vector.load %arg17[%c0_60, %c0_61] : memref<32x8xbf16, #tpu.memory_space<vmem>>, vector<32x8xbf16>
    %cst_62 = arith.constant dense<0.000000e+00> : vector<32x8xf32>
    %148 = tpu.matmul %146, %147, %cst_62 {dimension_numbers = #tpu.dot_dimension_numbers<[1], [0], [0], [1], [0, 0, 1, 1], [], []>} : vector<32x32xbf16>, vector<32x8xbf16>, vector<32x8xf32> -> vector<32x8xf32>
    %c0_63 = arith.constant 0 : index
    %c0_64 = arith.constant 0 : index
    %149 = vector.load %arg18[%c0_63, %c0_64] : memref<1x8xf32, #tpu.memory_space<vmem>>, vector<1x8xf32>
    %150 = vector.broadcast %149 : vector<1x8xf32> to vector<32x8xf32>
    %151 = arith.addf %148, %150 : vector<32x8xf32>
    %cst_65 = arith.constant 0.000000e+00 : f32
    %152 = vector.broadcast %cst_65 : f32 to vector<32x8xf32>
    %153 = arith.maximumf %151, %152 : vector<32x8xf32>
    %154 = vector.extract_strided_slice %153 {offsets = [0, 0], sizes = [8, 8], strides = [1, 1]} : vector<32x8xf32> to vector<8x8xf32>
    %cst_66 = arith.constant 0.000000e+00 : f32
    %155 = vector.broadcast %cst_66 : f32 to vector<8x8xf32>
    %156 = vector.extract_strided_slice %153 {offsets = [8, 0], sizes = [8, 8], strides = [1, 1]} : vector<32x8xf32> to vector<8x8xf32>
    %cst_67 = arith.constant 0.000000e+00 : f32
    %157 = vector.broadcast %cst_67 : f32 to vector<8x8xf32>
    %158 = vector.extract_strided_slice %153 {offsets = [16, 0], sizes = [8, 8], strides = [1, 1]} : vector<32x8xf32> to vector<8x8xf32>
    %cst_68 = arith.constant 0.000000e+00 : f32
    %159 = vector.broadcast %cst_68 : f32 to vector<8x8xf32>
    %160 = vector.extract_strided_slice %153 {offsets = [24, 0], sizes = [8, 8], strides = [1, 1]} : vector<32x8xf32> to vector<8x8xf32>
    %161 = tpu.concatenate %154, %155, %156, %157, %158, %159, %160 in 0 : vector<8x8xf32>, vector<8x8xf32>, vector<8x8xf32>, vector<8x8xf32>, vector<8x8xf32>, vector<8x8xf32>, vector<8x8xf32> -> vector<56x8xf32>
    %cst_69 = arith.constant 0.000000e+00 : f32
    %162 = vector.broadcast %cst_69 : f32 to vector<16x8xf32>
    %cst_70 = arith.constant 0.000000e+00 : f32
    %163 = vector.broadcast %cst_70 : f32 to vector<16x8xf32>
    %164 = tpu.concatenate %162, %161, %163 in 0 : vector<16x8xf32>, vector<56x8xf32>, vector<16x8xf32> -> vector<88x8xf32>
    %165 = vector.extract_strided_slice %164 {offsets = [0, 0], sizes = [64, 8], strides = [1, 1]} : vector<88x8xf32> to vector<64x8xf32>
    %166 = vector.extract_strided_slice %164 {offsets = [8, 0], sizes = [64, 8], strides = [1, 1]} : vector<88x8xf32> to vector<64x8xf32>
    %167 = vector.extract_strided_slice %164 {offsets = [16, 0], sizes = [64, 8], strides = [1, 1]} : vector<88x8xf32> to vector<64x8xf32>
    %168 = vector.extract_strided_slice %164 {offsets = [24, 0], sizes = [64, 8], strides = [1, 1]} : vector<88x8xf32> to vector<64x8xf32>
    %169 = tpu.concatenate %165, %166, %167, %168 in 1 : vector<64x8xf32>, vector<64x8xf32>, vector<64x8xf32>, vector<64x8xf32> -> vector<64x32xf32>
    %170 = arith.truncf %169 : vector<64x32xf32> to vector<64x32xbf16>
    %c0_71 = arith.constant 0 : index
    %c0_72 = arith.constant 0 : index
    %171 = vector.load %arg19[%c0_71, %c0_72] : memref<32x8xbf16, #tpu.memory_space<vmem>>, vector<32x8xbf16>
    %cst_73 = arith.constant dense<0.000000e+00> : vector<64x8xf32>
    %172 = tpu.matmul %170, %171, %cst_73 {dimension_numbers = #tpu.dot_dimension_numbers<[1], [0], [0], [1], [0, 0, 1, 1], [], []>} : vector<64x32xbf16>, vector<32x8xbf16>, vector<64x8xf32> -> vector<64x8xf32>
    %c0_74 = arith.constant 0 : index
    %c0_75 = arith.constant 0 : index
    %173 = vector.load %arg20[%c0_74, %c0_75] : memref<1x8xf32, #tpu.memory_space<vmem>>, vector<1x8xf32>
    %174 = vector.broadcast %173 : vector<1x8xf32> to vector<64x8xf32>
    %175 = arith.addf %172, %174 : vector<64x8xf32>
    %cst_76 = arith.constant 0.000000e+00 : f32
    %176 = vector.broadcast %cst_76 : f32 to vector<64x8xf32>
    %177 = arith.maximumf %175, %176 : vector<64x8xf32>
    %178 = vector.extract_strided_slice %177 {offsets = [0, 0], sizes = [8, 8], strides = [1, 1]} : vector<64x8xf32> to vector<8x8xf32>
    %cst_77 = arith.constant 0.000000e+00 : f32
    %179 = vector.broadcast %cst_77 : f32 to vector<8x8xf32>
    %180 = vector.extract_strided_slice %177 {offsets = [8, 0], sizes = [8, 8], strides = [1, 1]} : vector<64x8xf32> to vector<8x8xf32>
    %cst_78 = arith.constant 0.000000e+00 : f32
    %181 = vector.broadcast %cst_78 : f32 to vector<8x8xf32>
    %182 = vector.extract_strided_slice %177 {offsets = [16, 0], sizes = [8, 8], strides = [1, 1]} : vector<64x8xf32> to vector<8x8xf32>
    %cst_79 = arith.constant 0.000000e+00 : f32
    %183 = vector.broadcast %cst_79 : f32 to vector<8x8xf32>
    %184 = vector.extract_strided_slice %177 {offsets = [24, 0], sizes = [8, 8], strides = [1, 1]} : vector<64x8xf32> to vector<8x8xf32>
    %cst_80 = arith.constant 0.000000e+00 : f32
    %185 = vector.broadcast %cst_80 : f32 to vector<8x8xf32>
    %186 = vector.extract_strided_slice %177 {offsets = [32, 0], sizes = [8, 8], strides = [1, 1]} : vector<64x8xf32> to vector<8x8xf32>
    %cst_81 = arith.constant 0.000000e+00 : f32
    %187 = vector.broadcast %cst_81 : f32 to vector<8x8xf32>
    %188 = vector.extract_strided_slice %177 {offsets = [40, 0], sizes = [8, 8], strides = [1, 1]} : vector<64x8xf32> to vector<8x8xf32>
    %cst_82 = arith.constant 0.000000e+00 : f32
    %189 = vector.broadcast %cst_82 : f32 to vector<8x8xf32>
    %190 = vector.extract_strided_slice %177 {offsets = [48, 0], sizes = [8, 8], strides = [1, 1]} : vector<64x8xf32> to vector<8x8xf32>
    %cst_83 = arith.constant 0.000000e+00 : f32
    %191 = vector.broadcast %cst_83 : f32 to vector<8x8xf32>
    %192 = vector.extract_strided_slice %177 {offsets = [56, 0], sizes = [8, 8], strides = [1, 1]} : vector<64x8xf32> to vector<8x8xf32>
    %193 = tpu.concatenate %178, %179, %180, %181, %182, %183, %184, %185, %186, %187, %188, %189, %190, %191, %192 in 0 : vector<8x8xf32>, vector<8x8xf32>, vector<8x8xf32>, vector<8x8xf32>, vector<8x8xf32>, vector<8x8xf32>, vector<8x8xf32>, vector<8x8xf32>, vector<8x8xf32>, vector<8x8xf32>, vector<8x8xf32>, vector<8x8xf32>, vector<8x8xf32>, vector<8x8xf32>, vector<8x8xf32> -> vector<120x8xf32>
    %cst_84 = arith.constant 0.000000e+00 : f32
    %194 = vector.broadcast %cst_84 : f32 to vector<16x8xf32>
    %cst_85 = arith.constant 0.000000e+00 : f32
    %195 = vector.broadcast %cst_85 : f32 to vector<16x8xf32>
    %196 = tpu.concatenate %194, %193, %195 in 0 : vector<16x8xf32>, vector<120x8xf32>, vector<16x8xf32> -> vector<152x8xf32>
    %197 = vector.extract_strided_slice %196 {offsets = [0, 0], sizes = [128, 8], strides = [1, 1]} : vector<152x8xf32> to vector<128x8xf32>
    %198 = vector.extract_strided_slice %196 {offsets = [8, 0], sizes = [128, 8], strides = [1, 1]} : vector<152x8xf32> to vector<128x8xf32>
    %199 = vector.extract_strided_slice %196 {offsets = [16, 0], sizes = [128, 8], strides = [1, 1]} : vector<152x8xf32> to vector<128x8xf32>
    %200 = vector.extract_strided_slice %196 {offsets = [24, 0], sizes = [128, 8], strides = [1, 1]} : vector<152x8xf32> to vector<128x8xf32>
    %201 = tpu.concatenate %197, %198, %199, %200 in 1 : vector<128x8xf32>, vector<128x8xf32>, vector<128x8xf32>, vector<128x8xf32> -> vector<128x32xf32>
    %202 = arith.truncf %201 : vector<128x32xf32> to vector<128x32xbf16>
    %c0_86 = arith.constant 0 : index
    %c0_87 = arith.constant 0 : index
    %203 = vector.load %arg21[%c0_86, %c0_87] : memref<32x1xbf16, #tpu.memory_space<vmem>>, vector<32x1xbf16>
    %cst_88 = arith.constant dense<0.000000e+00> : vector<128x1xf32>
    %204 = tpu.matmul %202, %203, %cst_88 {dimension_numbers = #tpu.dot_dimension_numbers<[1], [0], [0], [1], [0, 0, 1, 1], [], []>} : vector<128x32xbf16>, vector<32x1xbf16>, vector<128x1xf32> -> vector<128x1xf32>
    %c0_89 = arith.constant 0 : index
    %c0_90 = arith.constant 0 : index
    %205 = vector.load %arg22[%c0_89, %c0_90] : memref<1x1xf32, #tpu.memory_space<vmem>>, vector<1x1xf32>
    %206 = vector.broadcast %205 : vector<1x1xf32> to vector<128x1xf32>
    %207 = arith.addf %204, %206 : vector<128x1xf32>
    %208 = vector.extract_strided_slice %207 {offsets = [0, 0], sizes = [8, 1], strides = [1, 1]} : vector<128x1xf32> to vector<8x1xf32>
    %209 = vector.extract_strided_slice %207 {offsets = [8, 0], sizes = [8, 1], strides = [1, 1]} : vector<128x1xf32> to vector<8x1xf32>
    %210 = vector.extract_strided_slice %207 {offsets = [16, 0], sizes = [8, 1], strides = [1, 1]} : vector<128x1xf32> to vector<8x1xf32>
    %211 = vector.extract_strided_slice %207 {offsets = [24, 0], sizes = [8, 1], strides = [1, 1]} : vector<128x1xf32> to vector<8x1xf32>
    %212 = vector.extract_strided_slice %207 {offsets = [32, 0], sizes = [8, 1], strides = [1, 1]} : vector<128x1xf32> to vector<8x1xf32>
    %213 = vector.extract_strided_slice %207 {offsets = [40, 0], sizes = [8, 1], strides = [1, 1]} : vector<128x1xf32> to vector<8x1xf32>
    %214 = vector.extract_strided_slice %207 {offsets = [48, 0], sizes = [8, 1], strides = [1, 1]} : vector<128x1xf32> to vector<8x1xf32>
    %215 = vector.extract_strided_slice %207 {offsets = [56, 0], sizes = [8, 1], strides = [1, 1]} : vector<128x1xf32> to vector<8x1xf32>
    %216 = vector.extract_strided_slice %207 {offsets = [64, 0], sizes = [8, 1], strides = [1, 1]} : vector<128x1xf32> to vector<8x1xf32>
    %217 = vector.extract_strided_slice %207 {offsets = [72, 0], sizes = [8, 1], strides = [1, 1]} : vector<128x1xf32> to vector<8x1xf32>
    %218 = vector.extract_strided_slice %207 {offsets = [80, 0], sizes = [8, 1], strides = [1, 1]} : vector<128x1xf32> to vector<8x1xf32>
    %219 = vector.extract_strided_slice %207 {offsets = [88, 0], sizes = [8, 1], strides = [1, 1]} : vector<128x1xf32> to vector<8x1xf32>
    %220 = vector.extract_strided_slice %207 {offsets = [96, 0], sizes = [8, 1], strides = [1, 1]} : vector<128x1xf32> to vector<8x1xf32>
    %221 = vector.extract_strided_slice %207 {offsets = [104, 0], sizes = [8, 1], strides = [1, 1]} : vector<128x1xf32> to vector<8x1xf32>
    %222 = vector.extract_strided_slice %207 {offsets = [112, 0], sizes = [8, 1], strides = [1, 1]} : vector<128x1xf32> to vector<8x1xf32>
    %223 = vector.extract_strided_slice %207 {offsets = [120, 0], sizes = [8, 1], strides = [1, 1]} : vector<128x1xf32> to vector<8x1xf32>
    %224 = tpu.concatenate %208, %209, %210, %211, %212, %213, %214, %215, %216, %217, %218, %219, %220, %221, %222, %223 in 1 : vector<8x1xf32>, vector<8x1xf32>, vector<8x1xf32>, vector<8x1xf32>, vector<8x1xf32>, vector<8x1xf32>, vector<8x1xf32>, vector<8x1xf32>, vector<8x1xf32>, vector<8x1xf32>, vector<8x1xf32>, vector<8x1xf32>, vector<8x1xf32>, vector<8x1xf32>, vector<8x1xf32>, vector<8x1xf32> -> vector<8x16xf32>
    %c0_91 = arith.constant 0 : index
    %c0_92 = arith.constant 0 : index
    %225 = vector.load %arg23[%c0_91, %c0_92] : memref<8x16xf32, #tpu.memory_space<vmem>>, vector<8x16xf32>
    tpu.vector_store %arg23[%c0_91, %c0_92], %224 {strides = array<i32>} : memref<8x16xf32, #tpu.memory_space<vmem>>, vector<8x16xf32>,
    return
  }
  func.func @transform_0(%arg0: i32) -> (i32, i32) {
    %c0_i32 = arith.constant 0 : i32
    %c0_i32_0 = arith.constant 0 : i32
    return %arg0, %c0_i32 : i32, i32
  }
  func.func @transform_1(%arg0: i32) -> (i32, i32) {
    %c0_i32 = arith.constant 0 : i32
    %c0_i32_0 = arith.constant 0 : i32
    return %arg0, %c0_i32 : i32, i32
  }
  func.func @transform_2(%arg0: i32) -> (i32, i32) {
    %c0_i32 = arith.constant 0 : i32
    %c0_i32_0 = arith.constant 0 : i32
    %c0_i32_1 = arith.constant 0 : i32
    return %c0_i32, %c0_i32_0 : i32, i32
  }
  func.func @transform_3(%arg0: i32) -> (i32, i32) {
    %c0_i32 = arith.constant 0 : i32
    %c0_i32_0 = arith.constant 0 : i32
    %c0_i32_1 = arith.constant 0 : i32
    return %c0_i32, %c0_i32_0 : i32, i32
  }
  func.func @transform_4(%arg0: i32) -> (i32, i32) {
    %c0_i32 = arith.constant 0 : i32
    %c0_i32_0 = arith.constant 0 : i32
    %c0_i32_1 = arith.constant 0 : i32
    return %c0_i32, %c0_i32_0 : i32, i32
  }
  func.func @transform_5(%arg0: i32) -> (i32, i32) {
    %c0_i32 = arith.constant 0 : i32
    %c0_i32_0 = arith.constant 0 : i32
    %c0_i32_1 = arith.constant 0 : i32
    return %c0_i32, %c0_i32_0 : i32, i32
  }
  func.func @transform_6(%arg0: i32) -> (i32, i32) {
    %c0_i32 = arith.constant 0 : i32
    %c0_i32_0 = arith.constant 0 : i32
    %c0_i32_1 = arith.constant 0 : i32
    return %c0_i32, %c0_i32_0 : i32, i32
  }
  func.func @transform_7(%arg0: i32) -> (i32, i32) {
    %c0_i32 = arith.constant 0 : i32
    %c0_i32_0 = arith.constant 0 : i32
    %c0_i32_1 = arith.constant 0 : i32
    return %c0_i32, %c0_i32_0 : i32, i32
  }
  func.func @transform_8(%arg0: i32) -> (i32, i32) {
    %c0_i32 = arith.constant 0 : i32
    %c0_i32_0 = arith.constant 0 : i32
    %c0_i32_1 = arith.constant 0 : i32
    return %c0_i32, %c0_i32_0 : i32, i32
  }
  func.func @transform_9(%arg0: i32) -> (i32, i32) {
    %c0_i32 = arith.constant 0 : i32
    %c0_i32_0 = arith.constant 0 : i32
    %c0_i32_1 = arith.constant 0 : i32
    return %c0_i32, %c0_i32_0 : i32, i32
  }
  func.func @transform_10(%arg0: i32) -> (i32, i32) {
    %c0_i32 = arith.constant 0 : i32
    %c0_i32_0 = arith.constant 0 : i32
    %c0_i32_1 = arith.constant 0 : i32
    return %c0_i32, %c0_i32_0 : i32, i32
  }
  func.func @transform_11(%arg0: i32) -> (i32, i32) {
    %c0_i32 = arith.constant 0 : i32
    %c0_i32_0 = arith.constant 0 : i32
    %c0_i32_1 = arith.constant 0 : i32
    return %c0_i32, %c0_i32_0 : i32, i32
  }
  func.func @transform_12(%arg0: i32) -> (i32, i32) {
    %c0_i32 = arith.constant 0 : i32
    %c0_i32_0 = arith.constant 0 : i32
    %c0_i32_1 = arith.constant 0 : i32
    return %c0_i32, %c0_i32_0 : i32, i32
  }
  func.func @transform_13(%arg0: i32) -> (i32, i32) {
    %c0_i32 = arith.constant 0 : i32
    %c0_i32_0 = arith.constant 0 : i32
    %c0_i32_1 = arith.constant 0 : i32
    return %c0_i32, %c0_i32_0 : i32, i32
  }
  func.func @transform_14(%arg0: i32) -> (i32, i32) {
    %c0_i32 = arith.constant 0 : i32
    %c0_i32_0 = arith.constant 0 : i32
    %c0_i32_1 = arith.constant 0 : i32
    return %c0_i32, %c0_i32_0 : i32, i32
  }
  func.func @transform_15(%arg0: i32) -> (i32, i32) {
    %c0_i32 = arith.constant 0 : i32
    %c0_i32_0 = arith.constant 0 : i32
    %c0_i32_1 = arith.constant 0 : i32
    return %c0_i32, %c0_i32_0 : i32, i32
  }
  func.func @transform_16(%arg0: i32) -> (i32, i32) {
    %c0_i32 = arith.constant 0 : i32
    %c0_i32_0 = arith.constant 0 : i32
    %c0_i32_1 = arith.constant 0 : i32
    return %c0_i32, %c0_i32_0 : i32, i32
  }
  func.func @transform_17(%arg0: i32) -> (i32, i32) {
    %c0_i32 = arith.constant 0 : i32
    %c0_i32_0 = arith.constant 0 : i32
    %c0_i32_1 = arith.constant 0 : i32
    return %c0_i32, %c0_i32_0 : i32, i32
  }
  func.func @transform_18(%arg0: i32) -> (i32, i32) {
    %c0_i32 = arith.constant 0 : i32
    %c0_i32_0 = arith.constant 0 : i32
    %c0_i32_1 = arith.constant 0 : i32
    return %c0_i32, %c0_i32_0 : i32, i32
  }
  func.func @transform_19(%arg0: i32) -> (i32, i32) {
    %c0_i32 = arith.constant 0 : i32
    %c0_i32_0 = arith.constant 0 : i32
    %c0_i32_1 = arith.constant 0 : i32
    return %c0_i32, %c0_i32_0 : i32, i32
  }
  func.func @transform_20(%arg0: i32) -> (i32, i32) {
    %c0_i32 = arith.constant 0 : i32
    %c0_i32_0 = arith.constant 0 : i32
    %c0_i32_1 = arith.constant 0 : i32
    return %c0_i32, %c0_i32_0 : i32, i32
  }
  func.func @transform_21(%arg0: i32) -> (i32, i32) {
    %c0_i32 = arith.constant 0 : i32
    %c0_i32_0 = arith.constant 0 : i32
    %c0_i32_1 = arith.constant 0 : i32
    return %c0_i32, %c0_i32_0 : i32, i32
  }
  func.func @transform_22(%arg0: i32) -> (i32, i32) {
    %c0_i32 = arith.constant 0 : i32
    %c0_i32_0 = arith.constant 0 : i32
    return %arg0, %c0_i32 : i32, i32
  }
  func.func @transform_23(%arg0: i32) -> (i32, i32) {
    %c0_i32 = arith.constant 0 : i32
    %c0_i32_0 = arith.constant 0 : i32
    return %arg0, %c0_i32 : i32, i32
  }
}

</mosaic_0001>

<llo_original>
// kernel: fwd.1
$region0: #{fwd.1}
  #allocation0 [shape = 'u32[]', space=smem, size = 0x4, offset = 0x4, fixed_abs, tag = 'smem constant byte address 0x4 - core index']
  #allocation1 [shape = 'u32[144,128]{1,0:T(1,128)}', space=vmem, size = 0x12000, scoped, tag = 'internal scratch']
  #allocation2 [shape = 'f32[1,1]{1,0:T(1,128)S(1)}', space=vmem, size = 0x200, scoped, tag = 'scoped memory for fwd.1']
  %s0 = inlined_call_operand.vmem [shape: f32[8,16], index: 0, kind: input, shape index: {}]
  %s1 = inlined_call_operand.vmem [shape: f32[8,8], index: 1, kind: input, shape index: {}]
  %s2 = inlined_call_operand.vmem [shape: bf16[4,8], index: 2, kind: input, shape index: {}]
  %s3 = inlined_call_operand.vmem [shape: f32[1,8], index: 3, kind: input, shape index: {}]
  %s4 = inlined_call_operand.vmem [shape: bf16[32,8], index: 4, kind: input, shape index: {}]
  %s5 = inlined_call_operand.vmem [shape: f32[1,8], index: 5, kind: input, shape index: {}]
  %s6 = inlined_call_operand.vmem [shape: bf16[32,8], index: 6, kind: input, shape index: {}]
  %s7 = inlined_call_operand.vmem [shape: f32[1,8], index: 7, kind: input, shape index: {}]
  %s8 = inlined_call_operand.vmem [shape: bf16[32,8], index: 8, kind: input, shape index: {}]
  %s9 = inlined_call_operand.vmem [shape: f32[1,8], index: 9, kind: input, shape index: {}]
  %s10 = inlined_call_operand.vmem [shape: bf16[8,16], index: 10, kind: input, shape index: {}]
  %s11 = inlined_call_operand.vmem [shape: f32[1,16], index: 11, kind: input, shape index: {}]
  %s12 = inlined_call_operand.vmem [shape: bf16[8,8], index: 12, kind: input, shape index: {}]
  %s13 = inlined_call_operand.vmem [shape: f32[1,8], index: 13, kind: input, shape index: {}]
  %s14 = inlined_call_operand.vmem [shape: bf16[32,8], index: 14, kind: input, shape index: {}]
  %s15 = inlined_call_operand.vmem [shape: f32[1,8], index: 15, kind: input, shape index: {}]
  %s16 = inlined_call_operand.vmem [shape: bf16[32,8], index: 16, kind: input, shape index: {}]
  %s17 = inlined_call_operand.vmem [shape: f32[1,8], index: 17, kind: input, shape index: {}]
  %s18 = inlined_call_operand.vmem [shape: bf16[32,8], index: 18, kind: input, shape index: {}]
  %s19 = inlined_call_operand.vmem [shape: f32[1,8], index: 19, kind: input, shape index: {}]
  %s20 = inlined_call_operand.vmem [shape: bf16[32,1], index: 20, kind: input, shape index: {}]
  %s21 = inlined_call_operand.<no memory space> [shape: f32[1,1], index: 21, kind: input, shape index: {}]
  %s22 = inlined_call_operand.vmem [shape: f32[8,16], index: 22, kind: output, shape index: {0}]
  %s23 = inlined_call_operand.vmem [shape: f32[8,16], index: 23, kind: output, shape index: {1}]
  %24 = xla_tuple %s22, %s23
  %s25 = sld [smem:[#allocation0]]
  $region106: #{fwd.1} parent=0
    _
  %s27 = ssub.s32 1, %s25
  %s28 = scalar_select 0, %s27, %s25
  %v29 = vstv %s21
  %30 = vst [vmem:[#allocation2] sm:$0x1] %v29
  // Predicated region
  $region2: #{fwd.1} parent=0 // pred_check
    _
  $region3: #{fwd.1} parent=0 // pred_check_branch
    %32 = sbr.rel (0) target = $region5
  $region4: #{fwd.1} parent=0 // pred_region
    _
  $region5: #{fwd.1} parent=0 // pred_fallthru
    _
  // Predicated region
  $region6: #{fwd.1} parent=0 // pred_check
    _
  $region7: #{fwd.1} parent=0 // pred_check_branch
    %34 = sbr.rel (0) target = $region9
  $region8: #{fwd.1} parent=0 // pred_region
    _
  $region9: #{fwd.1} parent=0 // pred_fallthru
    _
  // Predicated region
  $region10: #{fwd.1} parent=0 // pred_check
    _
  $region11: #{fwd.1} parent=0 // pred_check_branch
    %36 = sbr.rel (0) target = $region13
  $region12: #{fwd.1} parent=0 // pred_region
    _
  $region13: #{fwd.1} parent=0 // pred_fallthru
    _
  // Predicated region
  $region14: #{fwd.1} parent=0 // pred_check
    _
  $region15: #{fwd.1} parent=0 // pred_check_branch
    %38 = sbr.rel (0) target = $region17
  $region16: #{fwd.1} parent=0 // pred_region
    _
  $region17: #{fwd.1} parent=0 // pred_fallthru
    _
  // Predicated region
  $region18: #{fwd.1} parent=0 // pred_check
    _
  $region19: #{fwd.1} parent=0 // pred_check_branch
    %40 = sbr.rel (0) target = $region21
  $region20: #{fwd.1} parent=0 // pred_region
    _
  $region21: #{fwd.1} parent=0 // pred_fallthru
    _
  // Predicated region
  $region22: #{fwd.1} parent=0 // pred_check
    _
  $region23: #{fwd.1} parent=0 // pred_check_branch
    %42 = sbr.rel (0) target = $region25
  $region24: #{fwd.1} parent=0 // pred_region
    _
  $region25: #{fwd.1} parent=0 // pred_fallthru
    _
  // Predicated region
  $region26: #{fwd.1} parent=0 // pred_check
    _
  $region27: #{fwd.1} parent=0 // pred_check_branch
    %44 = sbr.rel (0) target = $region29
  $region28: #{fwd.1} parent=0 // pred_region
    _
  $region29: #{fwd.1} parent=0 // pred_fallthru
    _
  // Predicated region
  $region30: #{fwd.1} parent=0 // pred_check
    _
  $region31: #{fwd.1} parent=0 // pred_check_branch
    %46 = sbr.rel (0) target = $region33
  $region32: #{fwd.1} parent=0 // pred_region
    _
  $region33: #{fwd.1} parent=0 // pred_fallthru
    _
  // Predicated region
  $region34: #{fwd.1} parent=0 // pred_check
    _
  $region35: #{fwd.1} parent=0 // pred_check_branch
    %48 = sbr.rel (0) target = $region37
  $region36: #{fwd.1} parent=0 // pred_region
    _
  $region37: #{fwd.1} parent=0 // pred_fallthru
    _
  // Predicated region
  $region38: #{fwd.1} parent=0 // pred_check
    _
  $region39: #{fwd.1} parent=0 // pred_check_branch
    %50 = sbr.rel (0) target = $region41
  $region40: #{fwd.1} parent=0 // pred_region
    _
  $region41: #{fwd.1} parent=0 // pred_fallthru
    _
  // Predicated region
  $region42: #{fwd.1} parent=0 // pred_check
    _
  $region43: #{fwd.1} parent=0 // pred_check_branch
    %52 = sbr.rel (0) target = $region45
  $region44: #{fwd.1} parent=0 // pred_region
    _
  $region45: #{fwd.1} parent=0 // pred_fallthru
    _
  // Predicated region
  $region46: #{fwd.1} parent=0 // pred_check
    _
  $region47: #{fwd.1} parent=0 // pred_check_branch
    %54 = sbr.rel (0) target = $region49
  $region48: #{fwd.1} parent=0 // pred_region
    _
  $region49: #{fwd.1} parent=0 // pred_fallthru
    _
  // Predicated region
  $region50: #{fwd.1} parent=0 // pred_check
    _
  $region51: #{fwd.1} parent=0 // pred_check_branch
    %56 = sbr.rel (0) target = $region53
  $region52: #{fwd.1} parent=0 // pred_region
    _
  $region53: #{fwd.1} parent=0 // pred_fallthru
    _
  // Predicated region
  $region54: #{fwd.1} parent=0 // pred_check
    _
  $region55: #{fwd.1} parent=0 // pred_check_branch
    %58 = sbr.rel (0) target = $region57
  $region56: #{fwd.1} parent=0 // pred_region
    _
  $region57: #{fwd.1} parent=0 // pred_fallthru
    _
  // Predicated region
  $region58: #{fwd.1} parent=0 // pred_check
    _
  $region59: #{fwd.1} parent=0 // pred_check_branch
    %60 = sbr.rel (0) target = $region61
  $region60: #{fwd.1} parent=0 // pred_region
    _
  $region61: #{fwd.1} parent=0 // pred_fallthru
    _
  // Predicated region
  $region62: #{fwd.1} parent=0 // pred_check
    _
  $region63: #{fwd.1} parent=0 // pred_check_branch
    %62 = sbr.rel (0) target = $region65
  $region64: #{fwd.1} parent=0 // pred_region
    _
  $region65: #{fwd.1} parent=0 // pred_fallthru
    _
  // Predicated region
  $region66: #{fwd.1} parent=0 // pred_check
    _
  $region67: #{fwd.1} parent=0 // pred_check_branch
    %64 = sbr.rel (0) target = $region69
  $region68: #{fwd.1} parent=0 // pred_region
    _
  $region69: #{fwd.1} parent=0 // pred_fallthru
    _
  // Predicated region
  $region70: #{fwd.1} parent=0 // pred_check
    _
  $region71: #{fwd.1} parent=0 // pred_check_branch
    %66 = sbr.rel (0) target = $region73
  $region72: #{fwd.1} parent=0 // pred_region
    _
  $region73: #{fwd.1} parent=0 // pred_fallthru
    _
  // Predicated region
  $region74: #{fwd.1} parent=0 // pred_check
    _
  $region75: #{fwd.1} parent=0 // pred_check_branch
    %68 = sbr.rel (0) target = $region77
  $region76: #{fwd.1} parent=0 // pred_region
    _
  $region77: #{fwd.1} parent=0 // pred_fallthru
    _
  // Predicated region
  $region78: #{fwd.1} parent=0 // pred_check
    _
  $region79: #{fwd.1} parent=0 // pred_check_branch
    %70 = sbr.rel (0) target = $region81
  $region80: #{fwd.1} parent=0 // pred_region
    _
  $region81: #{fwd.1} parent=0 // pred_fallthru
    _
  // Predicated region
  $region82: #{fwd.1} parent=0 // pred_check
    _
  $region83: #{fwd.1} parent=0 // pred_check_branch
    %72 = sbr.rel (0) target = $region85
  $region84: #{fwd.1} parent=0 // pred_region
    _
  $region85: #{fwd.1} parent=0 // pred_fallthru
    _
  // Predicated region
  $region86: #{fwd.1} parent=0 // pred_check
    _
  $region87: #{fwd.1} parent=0 // pred_check_branch
    %74 = sbr.rel (0) target = $region89
  $region88: #{fwd.1} parent=0 // pred_region
    _
  $region89: #{fwd.1} parent=0 // pred_fallthru
    _
  %v76 = vld [vmem:[%s0] sm:$0xff]
  %78 = vrot.lane.b32.xlu0 %v76, 1
  %v79 = vpop.permute.xlu0 %78
  %vm81 = vcmask 7168
  %v82 = vsel %vm81, 0.0, %v79
  %vm83 = vcmask 138240
  %v84 = vsel %vm83, %v82, 0.0
  %86 = vrot.lane.b32.xlu0 %v84, 126
  %v87 = vpop.permute.xlu0 %86
  %89 = vrot.lane.b32.xlu0 %v84, 124
  %v90 = vpop.permute.xlu0 %89
  %92 = vrot.lane.b32.xlu0 %v84, 122
  %v93 = vpop.permute.xlu0 %92
  %95 = vrot.lane.b32.xlu0 %v84, 120
  %v96 = vpop.permute.xlu0 %95
  %98 = vrot.lane.b32.xlu0 %v84, 118
  %v99 = vpop.permute.xlu0 %98
  %101 = vrot.lane.b32.xlu0 %v84, 116
  %v102 = vpop.permute.xlu0 %101
  %104 = vrot.lane.b32.xlu0 %v84, 114
  %v105 = vpop.permute.xlu0 %104
  %v107 = vpack.c.bf16 %v87, %v84
  %v108 = vpack.c.bf16 %v93, %v90
  %v109 = vpack.c.bf16 %v99, %v96
  %v110 = vpack.c.bf16 %v105, %v102
  %v111 = vld [vmem:[%s2] sm:$0x3]
  %v112 = vld [vmem:[%s3] sm:$0x1]
  %v114 = vlaneseq
  %v115 = vshrl.u32 %v114, 7
  %v116 = vsub.s32 0, %v115
  %v117 = vrot.slane %v112, %v116
  %vm119 = vcmask 31744
  %v121 = vsel %vm119, %v107, 0
  %v124 = vsel %vm119, %v108, 0
  %v127 = vsel %vm119, %v109, 0
  %v130 = vsel %vm119, %v110, 0
  %vm132 = vcmask 1041408
  %v134 = vsel %vm132, %v111, 0
  %136 = vmatprep.subr.bf16.mxu0 0
  %137 = vmatpush1.bf16.msra.mxu0 0
  %138 = vmatprep.subr.bf16.mxu0 0
  %139 = vmatpush1.bf16.msra.mxu0 0
  %140 = vmatprep.subr.bf16.mxu0 0
  %141 = vmatpush1.bf16.msra.mxu0 0
  %142 = vmatprep.subr.bf16.mxu0 0
  %143 = vmatpush1.bf16.msra.mxu0 0
  %144 = vmatprep.subr.bf16.mxu0 0
  %145 = vmatpush1.bf16.msra.mxu0 0
  %146 = vmatprep.subr.bf16.mxu0 0
  %147 = vmatpush1.bf16.msra.mxu0 0
  %148 = vmatprep.subr.bf16.mxu0 0
  %149 = vmatpush1.bf16.msra.mxu0 0
  %150 = vmatprep.subr.bf16.mxu0 0
  %151 = vmatpush1.bf16.msra.mxu0 %v134
  %152 = vmatprep.subr.bf16.mxu0 0
  %153 = vmatpush2.bf16.msra.mxu0 0
  %154 = vmatprep.subr.bf16.mxu0 0
  %155 = vmatpush2.bf16.msra.mxu0 0
  %156 = vmatprep.subr.bf16.mxu0 0
  %157 = vmatpush2.bf16.msra.mxu0 0
  %158 = vmatprep.subr.bf16.mxu0 0
  %159 = vmatpush2.bf16.msra.mxu0 0
  %160 = vmatprep.subr.bf16.mxu0 0
  %161 = vmatpush2.bf16.msra.mxu0 0
  %162 = vmatprep.subr.bf16.mxu0 0
  %163 = vmatpush2.bf16.msra.mxu0 0
  %164 = vmatprep.subr.bf16.mxu0 0
  %165 = vmatpush2.bf16.msra.mxu0 0
  %166 = vmatprep.subr.bf16.mxu0 0
  %167 = vmatpush2.bf16.msra.mxu0 0
  %168 = vmatprep.mubr.bf16.mxu0 0
  %169 = vmatmul.mubr.bf16.gmra.mxu0 %v121
  %v170 = vpop.f32.mrf.mxu0
  %v171 = vadd.f32 %v117, %v170
  %v172 = vpop.f32.mrf.mxu0
  %v173 = vpop.f32.mrf.mxu0
  %v174 = vadd.f32 %v117, %v173
  %v175 = vpop.f32.mrf.mxu0
  %176 = vmatprep.mubr.bf16.mxu0 0
  %177 = vmatmul.mubr.bf16.gmra.mxu0 %v124
  %v178 = vpop.f32.mrf.mxu0
  %v179 = vadd.f32 %v117, %v178
  %v180 = vpop.f32.mrf.mxu0
  %v181 = vpop.f32.mrf.mxu0
  %v182 = vadd.f32 %v117, %v181
  %v183 = vpop.f32.mrf.mxu0
  %184 = vmatprep.mubr.bf16.mxu0 0
  %185 = vmatmul.mubr.bf16.gmra.mxu0 %v127
  %v186 = vpop.f32.mrf.mxu0
  %v187 = vadd.f32 %v117, %v186
  %v188 = vpop.f32.mrf.mxu0
  %v189 = vpop.f32.mrf.mxu0
  %v190 = vadd.f32 %v117, %v189
  %v191 = vpop.f32.mrf.mxu0
  %192 = vmatprep.mubr.bf16.mxu0 0
  %193 = vmatmul.mubr.bf16.gmra.mxu0 %v130
  %v194 = vpop.f32.mrf.mxu0
  %v195 = vadd.f32 %v117, %v194
  %v196 = vpop.f32.mrf.mxu0
  %v197 = vpop.f32.mrf.mxu0
  %v198 = vadd.f32 %v117, %v197
  %v199 = vpop.f32.mrf.mxu0
  %200 = vdwg.mxu0
  %v201 = vmax.f32 %v171, 0.0
  %v202 = vmax.f32 %v174, 0.0
  %v203 = vmax.f32 %v179, 0.0
  %v204 = vmax.f32 %v182, 0.0
  %v205 = vmax.f32 %v187, 0.0
  %v206 = vmax.f32 %v190, 0.0
  %v207 = vmax.f32 %v195, 0.0
  %v208 = vmax.f32 %v198, 0.0
  %213 = vrot.lane.b32.xlu0 %v201, 8
  %v214 = vpop.permute.xlu0 %213
  %215 = vrot.lane.b32.xlu0 %v203, 8
  %v216 = vpop.permute.xlu0 %215
  %217 = vrot.lane.b32.xlu0 %v205, 8
  %v218 = vpop.permute.xlu0 %217
  %219 = vrot.lane.b32.xlu0 %v207, 8
  %v220 = vpop.permute.xlu0 %219
  %229 = vrot.lane.b32.xlu0 %v202, 16
  %v230 = vpop.permute.xlu0 %229
  %231 = vrot.lane.b32.xlu0 %v204, 16
  %v232 = vpop.permute.xlu0 %231
  %233 = vrot.lane.b32.xlu0 %v206, 16
  %v234 = vpop.permute.xlu0 %233
  %235 = vrot.lane.b32.xlu0 %v208, 16
  %v236 = vpop.permute.xlu0 %235
  %242 = vrot.lane.b32.xlu0 %v203, 24
  %v243 = vpop.permute.xlu0 %242
  %244 = vrot.lane.b32.xlu0 %v205, 24
  %v245 = vpop.permute.xlu0 %244
  %246 = vrot.lane.b32.xlu0 %v207, 24
  %v247 = vpop.permute.xlu0 %246
  %248 = vrot.lane.b32.xlu0 0.0, 24
  %v249 = vpop.permute.xlu0 %248
  %vm254 = vcmask 64512
  %v255 = vsel %vm254, 0.0, %v214
  %v256 = vsel %vm254, %v202, %v216
  %v257 = vsel %vm254, %v204, %v218
  %v258 = vsel %vm254, %v206, %v220
  %vm259 = vcmask 130048
  %v260 = vsel %vm259, %v255, %v230
  %v261 = vsel %vm259, %v256, %v232
  %v262 = vsel %vm259, %v257, %v234
  %v263 = vsel %vm259, %v258, %v236
  %vm264 = vcmask 195584
  %v265 = vsel %vm264, %v260, %v243
  %v266 = vsel %vm264, %v261, %v245
  %v267 = vsel %vm264, %v262, %v247
  %v268 = vsel %vm264, %v263, %v249
  %v269 = vpack.c.bf16 %v266, %v265
  %v270 = vpack.c.bf16 %v268, %v267
  %v271 = vld [vmem:[%s4] sm:$0xf]
  %v272 = vld [vmem:[%s4 + $0x4] sm:$0xf]
  %v273 = vld [vmem:[%s4 + $0x8] sm:$0xf]
  %v274 = vld [vmem:[%s4 + $0xc] sm:$0xf]
  %v275 = vld [vmem:[%s5] sm:$0x1]
  %v277 = vlaneseq
  %v278 = vshrl.u32 %v277, 7
  %v279 = vsub.s32 0, %v278
  %v280 = vrot.slane %v275, %v279
  %v286 = vunpack.c.l.b16 %v271
  %v287 = vunpack.c.l.b16 %v272
  %v288 = vunpack.c.l.b16 %v273
  %v289 = vunpack.c.l.b16 %v274
  %v290 = vpack.c.b16 %v287, %v286
  %v291 = vpack.c.b16 %v289, %v288
  %vm294 = vcmask 261120
  %v296 = vsel %vm294, %v269, 0
  %v299 = vsel %vm294, %v270, 0
  %301 = vmatprep.subr.bf16.mxu0 0
  %302 = vmatpush1.bf16.msra.mxu0 0
  %303 = vmatprep.subr.bf16.mxu0 0
  %304 = vmatpush1.bf16.msra.mxu0 0
  %305 = vmatprep.subr.bf16.mxu0 0
  %306 = vmatpush1.bf16.msra.mxu0 0
  %307 = vmatprep.subr.bf16.mxu0 0
  %308 = vmatpush1.bf16.msra.mxu0 0
  %309 = vmatprep.subr.bf16.mxu0 0
  %310 = vmatpush1.bf16.msra.mxu0 0
  %311 = vmatprep.subr.bf16.mxu0 0
  %312 = vmatpush1.bf16.msra.mxu0 0
  %313 = vmatprep.subr.bf16.mxu0 0
  %314 = vmatpush1.bf16.msra.mxu0 %v291
  %315 = vmatprep.subr.bf16.mxu0 0
  %316 = vmatpush1.bf16.msra.mxu0 %v290
  %317 = vmatprep.subr.bf16.mxu0 0
  %318 = vmatpush2.bf16.msra.mxu0 0
  %319 = vmatprep.subr.bf16.mxu0 0
  %320 = vmatpush2.bf16.msra.mxu0 0
  %321 = vmatprep.subr.bf16.mxu0 0
  %322 = vmatpush2.bf16.msra.mxu0 0
  %323 = vmatprep.subr.bf16.mxu0 0
  %324 = vmatpush2.bf16.msra.mxu0 0
  %325 = vmatprep.subr.bf16.mxu0 0
  %326 = vmatpush2.bf16.msra.mxu0 0
  %327 = vmatprep.subr.bf16.mxu0 0
  %328 = vmatpush2.bf16.msra.mxu0 0
  %329 = vmatprep.subr.bf16.mxu0 0
  %330 = vmatpush2.bf16.msra.mxu0 0
  %331 = vmatprep.subr.bf16.mxu0 0
  %332 = vmatpush2.bf16.msra.mxu0 0
  %333 = vmatprep.mubr.bf16.mxu0 0
  %334 = vmatmul.mubr.bf16.gmra.mxu0 %v296
  %v335 = vpop.f32.mrf.mxu0
  %v336 = vadd.f32 %v280, %v335
  %v337 = vpop.f32.mrf.mxu0
  %v338 = vpop.f32.mrf.mxu0
  %v339 = vadd.f32 %v280, %v338
  %v340 = vpop.f32.mrf.mxu0
  %341 = vmatprep.mubr.bf16.mxu0 0
  %342 = vmatmul.mubr.bf16.gmra.mxu0 %v299
  %v343 = vpop.f32.mrf.mxu0
  %v344 = vadd.f32 %v280, %v343
  %v345 = vpop.f32.mrf.mxu0
  %v346 = vpop.f32.mrf.mxu0
  %v347 = vadd.f32 %v280, %v346
  %v348 = vpop.f32.mrf.mxu0
  %349 = vdwg.mxu0
  %v350 = vmax.f32 %v336, 0.0
  %v351 = vmax.f32 %v339, 0.0
  %v352 = vmax.f32 %v344, 0.0
  %v353 = vmax.f32 %v347, 0.0
  %356 = vrot.lane.b32.xlu0 %v350, 8
  %v357 = vpop.permute.xlu0 %356
  %358 = vrot.lane.b32.xlu0 %v352, 8
  %v359 = vpop.permute.xlu0 %358
  %364 = vrot.lane.b32.xlu0 %v351, 16
  %v365 = vpop.permute.xlu0 %364
  %366 = vrot.lane.b32.xlu0 %v353, 16
  %v367 = vpop.permute.xlu0 %366
  %370 = vrot.lane.b32.xlu0 %v352, 24
  %v371 = vpop.permute.xlu0 %370
  %v373 = vsel %vm254, 0.0, %v357
  %v374 = vsel %vm254, %v351, %v359
  %v375 = vsel %vm259, %v373, %v365
  %v376 = vsel %vm259, %v374, %v367
  %v377 = vsel %vm264, %v375, %v371
  %v378 = vsel %vm264, %v376, %v249
  %v379 = vpack.c.bf16 %v378, %v377
  %v380 = vld [vmem:[%s6] sm:$0xf]
  %v381 = vld [vmem:[%s6 + $0x4] sm:$0xf]
  %v382 = vld [vmem:[%s6 + $0x8] sm:$0xf]
  %v383 = vld [vmem:[%s6 + $0xc] sm:$0xf]
  %v384 = vld [vmem:[%s7] sm:$0x1]
  %v386 = vlaneseq
  %v387 = vshrl.u32 %v386, 7
  %v388 = vsub.s32 0, %v387
  %v389 = vrot.slane %v384, %v388
  %v395 = vunpack.c.l.b16 %v380
  %v396 = vunpack.c.l.b16 %v381
  %v397 = vunpack.c.l.b16 %v382
  %v398 = vunpack.c.l.b16 %v383
  %v399 = vpack.c.b16 %v396, %v395
  %v400 = vpack.c.b16 %v398, %v397
  %v404 = vsel %vm294, %v379, 0
  %406 = vmatprep.subr.bf16.mxu0 0
  %407 = vmatpush1.bf16.msra.mxu0 0
  %408 = vmatprep.subr.bf16.mxu0 0
  %409 = vmatpush1.bf16.msra.mxu0 0
  %410 = vmatprep.subr.bf16.mxu0 0
  %411 = vmatpush1.bf16.msra.mxu0 0
  %412 = vmatprep.subr.bf16.mxu0 0
  %413 = vmatpush1.bf16.msra.mxu0 0
  %414 = vmatprep.subr.bf16.mxu0 0
  %415 = vmatpush1.bf16.msra.mxu0 0
  %416 = vmatprep.subr.bf16.mxu0 0
  %417 = vmatpush1.bf16.msra.mxu0 0
  %418 = vmatprep.subr.bf16.mxu0 0
  %419 = vmatpush1.bf16.msra.mxu0 %v400
  %420 = vmatprep.subr.bf16.mxu0 0
  %421 = vmatpush1.bf16.msra.mxu0 %v399
  %422 = vmatprep.subr.bf16.mxu0 0
  %423 = vmatpush2.bf16.msra.mxu0 0
  %424 = vmatprep.subr.bf16.mxu0 0
  %425 = vmatpush2.bf16.msra.mxu0 0
  %426 = vmatprep.subr.bf16.mxu0 0
  %427 = vmatpush2.bf16.msra.mxu0 0
  %428 = vmatprep.subr.bf16.mxu0 0
  %429 = vmatpush2.bf16.msra.mxu0 0
  %430 = vmatprep.subr.bf16.mxu0 0
  %431 = vmatpush2.bf16.msra.mxu0 0
  %432 = vmatprep.subr.bf16.mxu0 0
  %433 = vmatpush2.bf16.msra.mxu0 0
  %434 = vmatprep.subr.bf16.mxu0 0
  %435 = vmatpush2.bf16.msra.mxu0 0
  %436 = vmatprep.subr.bf16.mxu0 0
  %437 = vmatpush2.bf16.msra.mxu0 0
  %438 = vmatprep.mubr.bf16.mxu0 0
  %439 = vmatmul.mubr.bf16.gmra.mxu0 %v404
  %v440 = vpop.f32.mrf.mxu0
  %v441 = vadd.f32 %v389, %v440
  %v442 = vpop.f32.mrf.mxu0
  %v443 = vpop.f32.mrf.mxu0
  %v444 = vadd.f32 %v389, %v443
  %v445 = vpop.f32.mrf.mxu0
  %446 = vdwg.mxu0
  %v447 = vmax.f32 %v441, 0.0
  %v448 = vmax.f32 %v444, 0.0
  %450 = vrot.lane.b32.xlu0 %v447, 8
  %v451 = vpop.permute.xlu0 %450
  %454 = vrot.lane.b32.xlu0 %v448, 16
  %v455 = vpop.permute.xlu0 %454
  %v457 = vsel %vm254, 0.0, %v451
  %v458 = vsel %vm259, %v457, %v455
  %v459 = vsel %vm264, %v458, %v249
  %v460 = vpack.c.bf16 %v459, %v459
  %v461 = vld [vmem:[%s8] sm:$0xf]
  %v462 = vld [vmem:[%s8 + $0x4] sm:$0xf]
  %v463 = vld [vmem:[%s8 + $0x8] sm:$0xf]
  %v464 = vld [vmem:[%s8 + $0xc] sm:$0xf]
  %v465 = vld [vmem:[%s9] sm:$0x1]
  %v467 = vlaneseq
  %v468 = vshrl.u32 %v467, 7
  %v469 = vsub.s32 0, %v468
  %v470 = vrot.slane %v465, %v469
  %v476 = vunpack.c.l.b16 %v461
  %v477 = vunpack.c.l.b16 %v462
  %v478 = vunpack.c.l.b16 %v463
  %v479 = vunpack.c.l.b16 %v464
  %v480 = vpack.c.b16 %v477, %v476
  %v481 = vpack.c.b16 %v479, %v478
  %v485 = vsel %vm294, %v460, 0
  %487 = vmatprep.subr.bf16.mxu0 0
  %488 = vmatpush1.bf16.msra.mxu0 0
  %489 = vmatprep.subr.bf16.mxu0 0
  %490 = vmatpush1.bf16.msra.mxu0 0
  %491 = vmatprep.subr.bf16.mxu0 0
  %492 = vmatpush1.bf16.msra.mxu0 0
  %493 = vmatprep.subr.bf16.mxu0 0
  %494 = vmatpush1.bf16.msra.mxu0 0
  %495 = vmatprep.subr.bf16.mxu0 0
  %496 = vmatpush1.bf16.msra.mxu0 0
  %497 = vmatprep.subr.bf16.mxu0 0
  %498 = vmatpush1.bf16.msra.mxu0 0
  %499 = vmatprep.subr.bf16.mxu0 0
  %500 = vmatpush1.bf16.msra.mxu0 %v481
  %501 = vmatprep.subr.bf16.mxu0 0
  %502 = vmatpush1.bf16.msra.mxu0 %v480
  %503 = vmatprep.subr.bf16.mxu0 0
  %504 = vmatpush2.bf16.msra.mxu0 0
  %505 = vmatprep.subr.bf16.mxu0 0
  %506 = vmatpush2.bf16.msra.mxu0 0
  %507 = vmatprep.subr.bf16.mxu0 0
  %508 = vmatpush2.bf16.msra.mxu0 0
  %509 = vmatprep.subr.bf16.mxu0 0
  %510 = vmatpush2.bf16.msra.mxu0 0
  %511 = vmatprep.subr.bf16.mxu0 0
  %512 = vmatpush2.bf16.msra.mxu0 0
  %513 = vmatprep.subr.bf16.mxu0 0
  %514 = vmatpush2.bf16.msra.mxu0 0
  %515 = vmatprep.subr.bf16.mxu0 0
  %516 = vmatpush2.bf16.msra.mxu0 0
  %517 = vmatprep.subr.bf16.mxu0 0
  %518 = vmatpush2.bf16.msra.mxu0 0
  %519 = vmatprep.mubr.bf16.mxu0 0
  %520 = vmatmul.mubr.bf16.gmra.mxu0 %v485
  %v521 = vpop.f32.mrf.mxu0
  %v522 = vadd.f32 %v470, %v521
  %v523 = vpop.f32.mrf.mxu0
  %v524 = vpop.f32.mrf.mxu0
  %v525 = vpop.f32.mrf.mxu0
  %526 = vdwg.mxu0
  %v527 = vmax.f32 %v522, 0.0
  %v528 = vpack.c.bf16 %v527, %v527
  %v529 = vld [vmem:[%s10] sm:$0xf]
  %v530 = vld [vmem:[%s11] sm:$0x1]
  %v532 = vlaneseq
  %v533 = vshrl.u32 %v532, 7
  %v534 = vsub.s32 0, %v533
  %v535 = vrot.slane %v530, %v534
  %v538 = vsel %vm254, %v528, 0
  %vm540 = vcmask 1043456
  %v542 = vsel %vm540, %v529, 0
  %544 = vmatprep.subr.bf16.mxu0 0
  %545 = vmatpush1.bf16.msra.mxu0 0
  %546 = vmatprep.subr.bf16.mxu0 0
  %547 = vmatpush1.bf16.msra.mxu0 0
  %548 = vmatprep.subr.bf16.mxu0 0
  %549 = vmatpush1.bf16.msra.mxu0 0
  %550 = vmatprep.subr.bf16.mxu0 0
  %551 = vmatpush1.bf16.msra.mxu0 0
  %552 = vmatprep.subr.bf16.mxu0 0
  %553 = vmatpush1.bf16.msra.mxu0 0
  %554 = vmatprep.subr.bf16.mxu0 0
  %555 = vmatpush1.bf16.msra.mxu0 0
  %556 = vmatprep.subr.bf16.mxu0 0
  %557 = vmatpush1.bf16.msra.mxu0 0
  %558 = vmatprep.subr.bf16.mxu0 0
  %559 = vmatpush1.bf16.msra.mxu0 %v542
  %560 = vmatprep.subr.bf16.mxu0 0
  %561 = vmatpush2.bf16.msra.mxu0 0
  %562 = vmatprep.subr.bf16.mxu0 0
  %563 = vmatpush2.bf16.msra.mxu0 0
  %564 = vmatprep.subr.bf16.mxu0 0
  %565 = vmatpush2.bf16.msra.mxu0 0
  %566 = vmatprep.subr.bf16.mxu0 0
  %567 = vmatpush2.bf16.msra.mxu0 0
  %568 = vmatprep.subr.bf16.mxu0 0
  %569 = vmatpush2.bf16.msra.mxu0 0
  %570 = vmatprep.subr.bf16.mxu0 0
  %571 = vmatpush2.bf16.msra.mxu0 0
  %572 = vmatprep.subr.bf16.mxu0 0
  %573 = vmatpush2.bf16.msra.mxu0 0
  %574 = vmatprep.subr.bf16.mxu0 0
  %575 = vmatpush2.bf16.msra.mxu0 0
  %576 = vmatprep.mubr.bf16.mxu0 0
  %577 = vmatmul.mubr.bf16.gmra.mxu0 %v538
  %v578 = vpop.f32.mrf.mxu0
  %v579 = vadd.f32 %v535, %v578
  %v580 = vpop.f32.mrf.mxu0
  %v581 = vpop.f32.mrf.mxu0
  %v582 = vpop.f32.mrf.mxu0
  %583 = vdwg.mxu0
  %v584 = vmax.f32 %v579, 0.0
  %585 = vst.msk [vmem:[%s23] sm:$0xff] %vm259, %v584
  %v586 = vld [vmem:[%s1] sm:$0xff]
  %v587 = vmul.f32 %v584, 0.5
  %v588 = vmul.f32 %v587, 1.442695
  %v589 = vpow.pop %v588
  %591 = vrot.lane.b32.xlu0 %v589, 120
  %v592 = vpop.permute.xlu0 %591
  %v594 = vmul.f32 %v586, %v592
  %v595 = vadd.f32 %v584, %v594
  %v596 = vpack.c.bf16 %v595, %v595
  %v597 = vld [vmem:[%s12] sm:$0xf]
  %v598 = vld [vmem:[%s13] sm:$0x1]
  %v600 = vlaneseq
  %v601 = vshrl.u32 %v600, 7
  %v602 = vsub.s32 0, %v601
  %v603 = vrot.slane %v598, %v602
  %v606 = vsel %vm254, %v596, 0
  %v609 = vsel %vm540, %v597, 0
  %611 = vmatprep.subr.bf16.mxu0 0
  %612 = vmatpush1.bf16.msra.mxu0 0
  %613 = vmatprep.subr.bf16.mxu0 0
  %614 = vmatpush1.bf16.msra.mxu0 0
  %615 = vmatprep.subr.bf16.mxu0 0
  %616 = vmatpush1.bf16.msra.mxu0 0
  %617 = vmatprep.subr.bf16.mxu0 0
  %618 = vmatpush1.bf16.msra.mxu0 0
  %619 = vmatprep.subr.bf16.mxu0 0
  %620 = vmatpush1.bf16.msra.mxu0 0
  %621 = vmatprep.subr.bf16.mxu0 0
  %622 = vmatpush1.bf16.msra.mxu0 0
  %623 = vmatprep.subr.bf16.mxu0 0
  %624 = vmatpush1.bf16.msra.mxu0 0
  %625 = vmatprep.subr.bf16.mxu0 0
  %626 = vmatpush1.bf16.msra.mxu0 %v609
  %627 = vmatprep.subr.bf16.mxu0 0
  %628 = vmatpush2.bf16.msra.mxu0 0
  %629 = vmatprep.subr.bf16.mxu0 0
  %630 = vmatpush2.bf16.msra.mxu0 0
  %631 = vmatprep.subr.bf16.mxu0 0
  %632 = vmatpush2.bf16.msra.mxu0 0
  %633 = vmatprep.subr.bf16.mxu0 0
  %634 = vmatpush2.bf16.msra.mxu0 0
  %635 = vmatprep.subr.bf16.mxu0 0
  %636 = vmatpush2.bf16.msra.mxu0 0
  %637 = vmatprep.subr.bf16.mxu0 0
  %638 = vmatpush2.bf16.msra.mxu0 0
  %639 = vmatprep.subr.bf16.mxu0 0
  %640 = vmatpush2.bf16.msra.mxu0 0
  %641 = vmatprep.subr.bf16.mxu0 0
  %642 = vmatpush2.bf16.msra.mxu0 0
  %643 = vmatprep.mubr.bf16.mxu0 0
  %644 = vmatmul.mubr.bf16.gmra.mxu0 %v606
  %v645 = vpop.f32.mrf.mxu0
  %v646 = vadd.f32 %v603, %v645
  %v647 = vpop.f32.mrf.mxu0
  %v648 = vpop.f32.mrf.mxu0
  %v649 = vpop.f32.mrf.mxu0
  %650 = vdwg.mxu0
  %v651 = vmax.f32 %v646, 0.0
  %653 = vrot.lane.b32.xlu0 0.0, 8
  %v654 = vpop.permute.xlu0 %653
  %655 = vrot.lane.b32.xlu0 %v651, 8
  %v656 = vpop.permute.xlu0 %655
  %659 = vrot.lane.b32.xlu0 %v651, 16
  %v660 = vpop.permute.xlu0 %659
  %661 = vrot.lane.b32.xlu0 0.0, 16
  %v662 = vpop.permute.xlu0 %661
  %v665 = vsel %vm254, 0.0, %v654
  %v666 = vsel %vm254, 0.0, %v656
  %v667 = vsel %vm259, %v665, %v660
  %v668 = vsel %vm259, %v666, %v662
  %v669 = vsel %vm264, %v667, %v249
  %v670 = vsel %vm264, %v668, %v249
  %v671 = vpack.c.bf16 %v670, %v669
  %v672 = vld [vmem:[%s14] sm:$0xf]
  %v673 = vld [vmem:[%s14 + $0x4] sm:$0xf]
  %v674 = vld [vmem:[%s14 + $0x8] sm:$0xf]
  %v675 = vld [vmem:[%s14 + $0xc] sm:$0xf]
  %v676 = vld [vmem:[%s15] sm:$0x1]
  %v678 = vlaneseq
  %v679 = vshrl.u32 %v678, 7
  %v680 = vsub.s32 0, %v679
  %v681 = vrot.slane %v676, %v680
  %v687 = vunpack.c.l.b16 %v672
  %v688 = vunpack.c.l.b16 %v673
  %v689 = vunpack.c.l.b16 %v674
  %v690 = vunpack.c.l.b16 %v675
  %v691 = vpack.c.b16 %v688, %v687
  %v692 = vpack.c.b16 %v690, %v689
  %v696 = vsel %vm294, %v671, 0
  %698 = vmatprep.subr.bf16.mxu0 0
  %699 = vmatpush1.bf16.msra.mxu0 0
  %700 = vmatprep.subr.bf16.mxu0 0
  %701 = vmatpush1.bf16.msra.mxu0 0
  %702 = vmatprep.subr.bf16.mxu0 0
  %703 = vmatpush1.bf16.msra.mxu0 0
  %704 = vmatprep.subr.bf16.mxu0 0
  %705 = vmatpush1.bf16.msra.mxu0 0
  %706 = vmatprep.subr.bf16.mxu0 0
  %707 = vmatpush1.bf16.msra.mxu0 0
  %708 = vmatprep.subr.bf16.mxu0 0
  %709 = vmatpush1.bf16.msra.mxu0 0
  %710 = vmatprep.subr.bf16.mxu0 0
  %711 = vmatpush1.bf16.msra.mxu0 %v692
  %712 = vmatprep.subr.bf16.mxu0 0
  %713 = vmatpush1.bf16.msra.mxu0 %v691
  %714 = vmatprep.subr.bf16.mxu0 0
  %715 = vmatpush2.bf16.msra.mxu0 0
  %716 = vmatprep.subr.bf16.mxu0 0
  %717 = vmatpush2.bf16.msra.mxu0 0
  %718 = vmatprep.subr.bf16.mxu0 0
  %719 = vmatpush2.bf16.msra.mxu0 0
  %720 = vmatprep.subr.bf16.mxu0 0
  %721 = vmatpush2.bf16.msra.mxu0 0
  %722 = vmatprep.subr.bf16.mxu0 0
  %723 = vmatpush2.bf16.msra.mxu0 0
  %724 = vmatprep.subr.bf16.mxu0 0
  %725 = vmatpush2.bf16.msra.mxu0 0
  %726 = vmatprep.subr.bf16.mxu0 0
  %727 = vmatpush2.bf16.msra.mxu0 0
  %728 = vmatprep.subr.bf16.mxu0 0
  %729 = vmatpush2.bf16.msra.mxu0 0
  %730 = vmatprep.mubr.bf16.mxu0 0
  %731 = vmatmul.mubr.bf16.gmra.mxu0 %v696
  %v732 = vpop.f32.mrf.mxu0
  %v733 = vadd.f32 %v681, %v732
  %v734 = vpop.f32.mrf.mxu0
  %v735 = vpop.f32.mrf.mxu0
  %v736 = vadd.f32 %v681, %v735
  %v737 = vpop.f32.mrf.mxu0
  %738 = vdwg.mxu0
  %v739 = vmax.f32 %v733, 0.0
  %v740 = vmax.f32 %v736, 0.0
  %743 = vrot.lane.b32.xlu0 %v739, 8
  %v744 = vpop.permute.xlu0 %743
  %745 = vrot.lane.b32.xlu0 %v740, 8
  %v746 = vpop.permute.xlu0 %745
  %749 = vrot.lane.b32.xlu0 %v739, 16
  %v750 = vpop.permute.xlu0 %749
  %751 = vrot.lane.b32.xlu0 %v740, 16
  %v752 = vpop.permute.xlu0 %751
  %755 = vrot.lane.b32.xlu0 %v740, 24
  %v756 = vpop.permute.xlu0 %755
  %v758 = vsel %vm254, 0.0, %v744
  %v759 = vsel %vm254, %v739, %v654
  %v760 = vsel %vm254, 0.0, %v746
  %v761 = vsel %vm259, %v665, %v750
  %v762 = vsel %vm259, %v758, %v662
  %v763 = vsel %vm259, %v759, %v752
  %v764 = vsel %vm259, %v760, %v662
  %v765 = vsel %vm264, %v761, %v249
  %v766 = vsel %vm264, %v762, %v756
  %v767 = vsel %vm264, %v763, %v249
  %v768 = vsel %vm264, %v764, %v249
  %v769 = vpack.c.bf16 %v766, %v765
  %v770 = vpack.c.bf16 %v768, %v767
  %v771 = vld [vmem:[%s16] sm:$0xf]
  %v772 = vld [vmem:[%s16 + $0x4] sm:$0xf]
  %v773 = vld [vmem:[%s16 + $0x8] sm:$0xf]
  %v774 = vld [vmem:[%s16 + $0xc] sm:$0xf]
  %v775 = vld [vmem:[%s17] sm:$0x1]
  %v777 = vlaneseq
  %v778 = vshrl.u32 %v777, 7
  %v779 = vsub.s32 0, %v778
  %v780 = vrot.slane %v775, %v779
  %v786 = vunpack.c.l.b16 %v771
  %v787 = vunpack.c.l.b16 %v772
  %v788 = vunpack.c.l.b16 %v773
  %v789 = vunpack.c.l.b16 %v774
  %v790 = vpack.c.b16 %v787, %v786
  %v791 = vpack.c.b16 %v789, %v788
  %v795 = vsel %vm294, %v769, 0
  %v798 = vsel %vm294, %v770, 0
  %800 = vmatprep.subr.bf16.mxu0 0
  %801 = vmatpush1.bf16.msra.mxu0 0
  %802 = vmatprep.subr.bf16.mxu0 0
  %803 = vmatpush1.bf16.msra.mxu0 0
  %804 = vmatprep.subr.bf16.mxu0 0
  %805 = vmatpush1.bf16.msra.mxu0 0
  %806 = vmatprep.subr.bf16.mxu0 0
  %807 = vmatpush1.bf16.msra.mxu0 0
  %808 = vmatprep.subr.bf16.mxu0 0
  %809 = vmatpush1.bf16.msra.mxu0 0
  %810 = vmatprep.subr.bf16.mxu0 0
  %811 = vmatpush1.bf16.msra.mxu0 0
  %812 = vmatprep.subr.bf16.mxu0 0
  %813 = vmatpush1.bf16.msra.mxu0 %v791
  %814 = vmatprep.subr.bf16.mxu0 0
  %815 = vmatpush1.bf16.msra.mxu0 %v790
  %816 = vmatprep.subr.bf16.mxu0 0
  %817 = vmatpush2.bf16.msra.mxu0 0
  %818 = vmatprep.subr.bf16.mxu0 0
  %819 = vmatpush2.bf16.msra.mxu0 0
  %820 = vmatprep.subr.bf16.mxu0 0
  %821 = vmatpush2.bf16.msra.mxu0 0
  %822 = vmatprep.subr.bf16.mxu0 0
  %823 = vmatpush2.bf16.msra.mxu0 0
  %824 = vmatprep.subr.bf16.mxu0 0
  %825 = vmatpush2.bf16.msra.mxu0 0
  %826 = vmatprep.subr.bf16.mxu0 0
  %827 = vmatpush2.bf16.msra.mxu0 0
  %828 = vmatprep.subr.bf16.mxu0 0
  %829 = vmatpush2.bf16.msra.mxu0 0
  %830 = vmatprep.subr.bf16.mxu0 0
  %831 = vmatpush2.bf16.msra.mxu0 0
  %832 = vmatprep.mubr.bf16.mxu0 0
  %833 = vmatmul.mubr.bf16.gmra.mxu0 %v795
  %v834 = vpop.f32.mrf.mxu0
  %v835 = vadd.f32 %v780, %v834
  %v836 = vpop.f32.mrf.mxu0
  %v837 = vpop.f32.mrf.mxu0
  %v838 = vadd.f32 %v780, %v837
  %v839 = vpop.f32.mrf.mxu0
  %840 = vmatprep.mubr.bf16.mxu0 0
  %841 = vmatmul.mubr.bf16.gmra.mxu0 %v798
  %v842 = vpop.f32.mrf.mxu0
  %v843 = vadd.f32 %v780, %v842
  %v844 = vpop.f32.mrf.mxu0
  %v845 = vpop.f32.mrf.mxu0
  %v846 = vadd.f32 %v780, %v845
  %v847 = vpop.f32.mrf.mxu0
  %848 = vdwg.mxu0
  %v849 = vmax.f32 %v835, 0.0
  %v850 = vmax.f32 %v838, 0.0
  %v851 = vmax.f32 %v843, 0.0
  %v852 = vmax.f32 %v846, 0.0
  %857 = vrot.lane.b32.xlu0 %v849, 8
  %v858 = vpop.permute.xlu0 %857
  %859 = vrot.lane.b32.xlu0 %v850, 8
  %v860 = vpop.permute.xlu0 %859
  %861 = vrot.lane.b32.xlu0 %v851, 8
  %v862 = vpop.permute.xlu0 %861
  %863 = vrot.lane.b32.xlu0 %v852, 8
  %v864 = vpop.permute.xlu0 %863
  %869 = vrot.lane.b32.xlu0 %v849, 16
  %v870 = vpop.permute.xlu0 %869
  %871 = vrot.lane.b32.xlu0 %v850, 16
  %v872 = vpop.permute.xlu0 %871
  %873 = vrot.lane.b32.xlu0 %v851, 16
  %v874 = vpop.permute.xlu0 %873
  %875 = vrot.lane.b32.xlu0 %v852, 16
  %v876 = vpop.permute.xlu0 %875
  %881 = vrot.lane.b32.xlu0 %v850, 24
  %v882 = vpop.permute.xlu0 %881
  %883 = vrot.lane.b32.xlu0 %v851, 24
  %v884 = vpop.permute.xlu0 %883
  %885 = vrot.lane.b32.xlu0 %v852, 24
  %v886 = vpop.permute.xlu0 %885
  %v890 = vsel %vm254, 0.0, %v858
  %v891 = vsel %vm254, %v849, %v654
  %v892 = vsel %vm254, 0.0, %v860
  %v893 = vsel %vm254, %v850, %v654
  %v894 = vsel %vm254, 0.0, %v862
  %v895 = vsel %vm254, %v851, %v654
  %v896 = vsel %vm254, 0.0, %v864
  %v897 = vsel %vm259, %v665, %v870
  %v898 = vsel %vm259, %v890, %v662
  %v899 = vsel %vm259, %v891, %v872
  %v900 = vsel %vm259, %v892, %v662
  %v901 = vsel %vm259, %v893, %v874
  %v902 = vsel %vm259, %v894, %v662
  %v903 = vsel %vm259, %v895, %v876
  %v904 = vsel %vm259, %v896, %v662
  %v905 = vsel %vm264, %v897, %v249
  %v906 = vsel %vm264, %v898, %v882
  %v907 = vsel %vm264, %v899, %v249
  %v908 = vsel %vm264, %v900, %v884
  %v909 = vsel %vm264, %v901, %v249
  %v910 = vsel %vm264, %v902, %v886
  %v911 = vsel %vm264, %v903, %v249
  %v912 = vsel %vm264, %v904, %v249
  %v913 = vpack.c.bf16 %v906, %v905
  %v914 = vpack.c.bf16 %v908, %v907
  %v915 = vpack.c.bf16 %v910, %v909
  %v916 = vpack.c.bf16 %v912, %v911
  %v917 = vld [vmem:[%s18] sm:$0xf]
  %v918 = vld [vmem:[%s18 + $0x4] sm:$0xf]
  %v919 = vld [vmem:[%s18 + $0x8] sm:$0xf]
  %v920 = vld [vmem:[%s18 + $0xc] sm:$0xf]
  %v921 = vld [vmem:[%s19] sm:$0x1]
  %v923 = vlaneseq
  %v924 = vshrl.u32 %v923, 7
  %v925 = vsub.s32 0, %v924
  %v926 = vrot.slane %v921, %v925
  %v932 = vunpack.c.l.b16 %v917
  %v933 = vunpack.c.l.b16 %v918
  %v934 = vunpack.c.l.b16 %v919
  %v935 = vunpack.c.l.b16 %v920
  %v936 = vpack.c.b16 %v933, %v932
  %v937 = vpack.c.b16 %v935, %v934
  %v941 = vsel %vm294, %v913, 0
  %v944 = vsel %vm294, %v914, 0
  %v947 = vsel %vm294, %v915, 0
  %v950 = vsel %vm294, %v916, 0
  %952 = vmatprep.subr.bf16.mxu0 0
  %953 = vmatpush1.bf16.msra.mxu0 0
  %954 = vmatprep.subr.bf16.mxu0 0
  %955 = vmatpush1.bf16.msra.mxu0 0
  %956 = vmatprep.subr.bf16.mxu0 0
  %957 = vmatpush1.bf16.msra.mxu0 0
  %958 = vmatprep.subr.bf16.mxu0 0
  %959 = vmatpush1.bf16.msra.mxu0 0
  %960 = vmatprep.subr.bf16.mxu0 0
  %961 = vmatpush1.bf16.msra.mxu0 0
  %962 = vmatprep.subr.bf16.mxu0 0
  %963 = vmatpush1.bf16.msra.mxu0 0
  %964 = vmatprep.subr.bf16.mxu0 0
  %965 = vmatpush1.bf16.msra.mxu0 %v937
  %966 = vmatprep.subr.bf16.mxu0 0
  %967 = vmatpush1.bf16.msra.mxu0 %v936
  %968 = vmatprep.subr.bf16.mxu0 0
  %969 = vmatpush2.bf16.msra.mxu0 0
  %970 = vmatprep.subr.bf16.mxu0 0
  %971 = vmatpush2.bf16.msra.mxu0 0
  %972 = vmatprep.subr.bf16.mxu0 0
  %973 = vmatpush2.bf16.msra.mxu0 0
  %974 = vmatprep.subr.bf16.mxu0 0
  %975 = vmatpush2.bf16.msra.mxu0 0
  %976 = vmatprep.subr.bf16.mxu0 0
  %977 = vmatpush2.bf16.msra.mxu0 0
  %978 = vmatprep.subr.bf16.mxu0 0
  %979 = vmatpush2.bf16.msra.mxu0 0
  %980 = vmatprep.subr.bf16.mxu0 0
  %981 = vmatpush2.bf16.msra.mxu0 0
  %982 = vmatprep.subr.bf16.mxu0 0
  %983 = vmatpush2.bf16.msra.mxu0 0
  %984 = vmatprep.mubr.bf16.mxu0 0
  %985 = vmatmul.mubr.bf16.gmra.mxu0 %v941
  %v986 = vpop.f32.mrf.mxu0
  %v987 = vadd.f32 %v926, %v986
  %v988 = vpop.f32.mrf.mxu0
  %v989 = vpop.f32.mrf.mxu0
  %v990 = vadd.f32 %v926, %v989
  %v991 = vpop.f32.mrf.mxu0
  %992 = vmatprep.mubr.bf16.mxu0 0
  %993 = vmatmul.mubr.bf16.gmra.mxu0 %v944
  %v994 = vpop.f32.mrf.mxu0
  %v995 = vadd.f32 %v926, %v994
  %v996 = vpop.f32.mrf.mxu0
  %v997 = vpop.f32.mrf.mxu0
  %v998 = vadd.f32 %v926, %v997
  %v999 = vpop.f32.mrf.mxu0
  %1000 = vmatprep.mubr.bf16.mxu0 0
  %1001 = vmatmul.mubr.bf16.gmra.mxu0 %v947
  %v1002 = vpop.f32.mrf.mxu0
  %v1003 = vadd.f32 %v926, %v1002
  %v1004 = vpop.f32.mrf.mxu0
  %v1005 = vpop.f32.mrf.mxu0
  %v1006 = vadd.f32 %v926, %v1005
  %v1007 = vpop.f32.mrf.mxu0
  %1008 = vmatprep.mubr.bf16.mxu0 0
  %1009 = vmatmul.mubr.bf16.gmra.mxu0 %v950
  %v1010 = vpop.f32.mrf.mxu0
  %v1011 = vadd.f32 %v926, %v1010
  %v1012 = vpop.f32.mrf.mxu0
  %v1013 = vpop.f32.mrf.mxu0
  %v1014 = vadd.f32 %v926, %v1013
  %v1015 = vpop.f32.mrf.mxu0
  %1016 = vdwg.mxu0
  %v1017 = vmax.f32 %v987, 0.0
  %v1018 = vmax.f32 %v990, 0.0
  %v1019 = vmax.f32 %v995, 0.0
  %v1020 = vmax.f32 %v998, 0.0
  %v1021 = vmax.f32 %v1003, 0.0
  %v1022 = vmax.f32 %v1006, 0.0
  %v1023 = vmax.f32 %v1011, 0.0
  %v1024 = vmax.f32 %v1014, 0.0
  %1033 = vrot.lane.b32.xlu0 %v1017, 8
  %v1034 = vpop.permute.xlu0 %1033
  %1035 = vrot.lane.b32.xlu0 %v1018, 8
  %v1036 = vpop.permute.xlu0 %1035
  %1037 = vrot.lane.b32.xlu0 %v1019, 8
  %v1038 = vpop.permute.xlu0 %1037
  %1039 = vrot.lane.b32.xlu0 %v1020, 8
  %v1040 = vpop.permute.xlu0 %1039
  %1041 = vrot.lane.b32.xlu0 %v1021, 8
  %v1042 = vpop.permute.xlu0 %1041
  %1043 = vrot.lane.b32.xlu0 %v1022, 8
  %v1044 = vpop.permute.xlu0 %1043
  %1045 = vrot.lane.b32.xlu0 %v1023, 8
  %v1046 = vpop.permute.xlu0 %1045
  %1047 = vrot.lane.b32.xlu0 %v1024, 8
  %v1048 = vpop.permute.xlu0 %1047
  %1057 = vrot.lane.b32.xlu0 %v1017, 16
  %v1058 = vpop.permute.xlu0 %1057
  %1059 = vrot.lane.b32.xlu0 %v1018, 16
  %v1060 = vpop.permute.xlu0 %1059
  %1061 = vrot.lane.b32.xlu0 %v1019, 16
  %v1062 = vpop.permute.xlu0 %1061
  %1063 = vrot.lane.b32.xlu0 %v1020, 16
  %v1064 = vpop.permute.xlu0 %1063
  %1065 = vrot.lane.b32.xlu0 %v1021, 16
  %v1066 = vpop.permute.xlu0 %1065
  %1067 = vrot.lane.b32.xlu0 %v1022, 16
  %v1068 = vpop.permute.xlu0 %1067
  %1069 = vrot.lane.b32.xlu0 %v1023, 16
  %v1070 = vpop.permute.xlu0 %1069
  %1071 = vrot.lane.b32.xlu0 %v1024, 16
  %v1072 = vpop.permute.xlu0 %1071
  %1081 = vrot.lane.b32.xlu0 %v1018, 24
  %v1082 = vpop.permute.xlu0 %1081
  %1083 = vrot.lane.b32.xlu0 %v1019, 24
  %v1084 = vpop.permute.xlu0 %1083
  %1085 = vrot.lane.b32.xlu0 %v1020, 24
  %v1086 = vpop.permute.xlu0 %1085
  %1087 = vrot.lane.b32.xlu0 %v1021, 24
  %v1088 = vpop.permute.xlu0 %1087
  %1089 = vrot.lane.b32.xlu0 %v1022, 24
  %v1090 = vpop.permute.xlu0 %1089
  %1091 = vrot.lane.b32.xlu0 %v1023, 24
  %v1092 = vpop.permute.xlu0 %1091
  %1093 = vrot.lane.b32.xlu0 %v1024, 24
  %v1094 = vpop.permute.xlu0 %1093
  %v1102 = vsel %vm254, 0.0, %v1034
  %v1103 = vsel %vm254, %v1017, %v654
  %v1104 = vsel %vm254, 0.0, %v1036
  %v1105 = vsel %vm254, %v1018, %v654
  %v1106 = vsel %vm254, 0.0, %v1038
  %v1107 = vsel %vm254, %v1019, %v654
  %v1108 = vsel %vm254, 0.0, %v1040
  %v1109 = vsel %vm254, %v1020, %v654
  %v1110 = vsel %vm254, 0.0, %v1042
  %v1111 = vsel %vm254, %v1021, %v654
  %v1112 = vsel %vm254, 0.0, %v1044
  %v1113 = vsel %vm254, %v1022, %v654
  %v1114 = vsel %vm254, 0.0, %v1046
  %v1115 = vsel %vm254, %v1023, %v654
  %v1116 = vsel %vm254, 0.0, %v1048
  %v1117 = vsel %vm259, %v665, %v1058
  %v1118 = vsel %vm259, %v1102, %v662
  %v1119 = vsel %vm259, %v1103, %v1060
  %v1120 = vsel %vm259, %v1104, %v662
  %v1121 = vsel %vm259, %v1105, %v1062
  %v1122 = vsel %vm259, %v1106, %v662
  %v1123 = vsel %vm259, %v1107, %v1064
  %v1124 = vsel %vm259, %v1108, %v662
  %v1125 = vsel %vm259, %v1109, %v1066
  %v1126 = vsel %vm259, %v1110, %v662
  %v1127 = vsel %vm259, %v1111, %v1068
  %v1128 = vsel %vm259, %v1112, %v662
  %v1129 = vsel %vm259, %v1113, %v1070
  %v1130 = vsel %vm259, %v1114, %v662
  %v1131 = vsel %vm259, %v1115, %v1072
  %v1132 = vsel %vm259, %v1116, %v662
  %v1133 = vsel %vm264, %v1117, %v249
  %v1134 = vsel %vm264, %v1118, %v1082
  %v1135 = vsel %vm264, %v1119, %v249
  %v1136 = vsel %vm264, %v1120, %v1084
  %v1137 = vsel %vm264, %v1121, %v249
  %v1138 = vsel %vm264, %v1122, %v1086
  %v1139 = vsel %vm264, %v1123, %v249
  %v1140 = vsel %vm264, %v1124, %v1088
  %v1141 = vsel %vm264, %v1125, %v249
  %v1142 = vsel %vm264, %v1126, %v1090
  %v1143 = vsel %vm264, %v1127, %v249
  %v1144 = vsel %vm264, %v1128, %v1092
  %v1145 = vsel %vm264, %v1129, %v249
  %v1146 = vsel %vm264, %v1130, %v1094
  %v1147 = vsel %vm264, %v1131, %v249
  %v1148 = vsel %vm264, %v1132, %v249
  %v1149 = vpack.c.bf16 %v1134, %v1133
  %v1150 = vpack.c.bf16 %v1136, %v1135
  %v1151 = vpack.c.bf16 %v1138, %v1137
  %v1152 = vpack.c.bf16 %v1140, %v1139
  %v1153 = vpack.c.bf16 %v1142, %v1141
  %v1154 = vpack.c.bf16 %v1144, %v1143
  %v1155 = vpack.c.bf16 %v1146, %v1145
  %v1156 = vpack.c.bf16 %v1148, %v1147
  %v1157 = vld [vmem:[%s20] sm:$0xf]
  %v1158 = vld [vmem:[%s20 + $0x4] sm:$0xf]
  %v1159 = vld [vmem:[%s20 + $0x8] sm:$0xf]
  %v1160 = vld [vmem:[%s20 + $0xc] sm:$0xf]
  %v1161 = vld [vmem:[#allocation2] sm:$0x1]
  %v1163 = vlaneseq
  %v1164 = vshrl.u32 %v1163, 7
  %v1165 = vsub.s32 0, %v1164
  %v1166 = vrot.slane %v1161, %v1165
  %v1172 = vunpack.c.l.b16 %v1157
  %v1173 = vunpack.c.l.b16 %v1158
  %v1174 = vunpack.c.l.b16 %v1159
  %v1175 = vunpack.c.l.b16 %v1160
  %v1176 = vpack.c.b16 %v1173, %v1172
  %v1177 = vpack.c.b16 %v1175, %v1174
  %v1181 = vsel %vm294, %v1149, 0
  %v1184 = vsel %vm294, %v1150, 0
  %v1187 = vsel %vm294, %v1151, 0
  %v1190 = vsel %vm294, %v1152, 0
  %v1193 = vsel %vm294, %v1153, 0
  %v1196 = vsel %vm294, %v1154, 0
  %v1199 = vsel %vm294, %v1155, 0
  %v1202 = vsel %vm294, %v1156, 0
  %1204 = vmatprep.subr.bf16.mxu0 0
  %1205 = vmatpush1.bf16.msra.mxu0 0
  %1206 = vmatprep.subr.bf16.mxu0 0
  %1207 = vmatpush1.bf16.msra.mxu0 0
  %1208 = vmatprep.subr.bf16.mxu0 0
  %1209 = vmatpush1.bf16.msra.mxu0 0
  %1210 = vmatprep.subr.bf16.mxu0 0
  %1211 = vmatpush1.bf16.msra.mxu0 0
  %1212 = vmatprep.subr.bf16.mxu0 0
  %1213 = vmatpush1.bf16.msra.mxu0 0
  %1214 = vmatprep.subr.bf16.mxu0 0
  %1215 = vmatpush1.bf16.msra.mxu0 0
  %1216 = vmatprep.subr.bf16.mxu0 0
  %1217 = vmatpush1.bf16.msra.mxu0 %v1177
  %1218 = vmatprep.subr.bf16.mxu0 0
  %1219 = vmatpush1.bf16.msra.mxu0 %v1176
  %1220 = vmatprep.subr.bf16.mxu0 0
  %1221 = vmatpush2.bf16.msra.mxu0 0
  %1222 = vmatprep.subr.bf16.mxu0 0
  %1223 = vmatpush2.bf16.msra.mxu0 0
  %1224 = vmatprep.subr.bf16.mxu0 0
  %1225 = vmatpush2.bf16.msra.mxu0 0
  %1226 = vmatprep.subr.bf16.mxu0 0
  %1227 = vmatpush2.bf16.msra.mxu0 0
  %1228 = vmatprep.subr.bf16.mxu0 0
  %1229 = vmatpush2.bf16.msra.mxu0 0
  %1230 = vmatprep.subr.bf16.mxu0 0
  %1231 = vmatpush2.bf16.msra.mxu0 0
  %1232 = vmatprep.subr.bf16.mxu0 0
  %1233 = vmatpush2.bf16.msra.mxu0 0
  %1234 = vmatprep.subr.bf16.mxu0 0
  %1235 = vmatpush2.bf16.msra.mxu0 0
  %1236 = vmatprep.mubr.bf16.mxu0 0
  %1237 = vmatmul.mubr.bf16.gmra.mxu0 %v1181
  %v1238 = vpop.f32.mrf.mxu0
  %v1239 = vadd.f32 %v1166, %v1238
  %v1240 = vpop.f32.mrf.mxu0
  %v1241 = vpop.f32.mrf.mxu0
  %v1242 = vadd.f32 %v1166, %v1241
  %v1243 = vpop.f32.mrf.mxu0
  %1244 = vmatprep.mubr.bf16.mxu0 0
  %1245 = vmatmul.mubr.bf16.gmra.mxu0 %v1184
  %v1246 = vpop.f32.mrf.mxu0
  %v1247 = vadd.f32 %v1166, %v1246
  %v1248 = vpop.f32.mrf.mxu0
  %v1249 = vpop.f32.mrf.mxu0
  %v1250 = vadd.f32 %v1166, %v1249
  %v1251 = vpop.f32.mrf.mxu0
  %1252 = vmatprep.mubr.bf16.mxu0 0
  %1253 = vmatmul.mubr.bf16.gmra.mxu0 %v1187
  %v1254 = vpop.f32.mrf.mxu0
  %v1255 = vadd.f32 %v1166, %v1254
  %v1256 = vpop.f32.mrf.mxu0
  %v1257 = vpop.f32.mrf.mxu0
  %v1258 = vadd.f32 %v1166, %v1257
  %v1259 = vpop.f32.mrf.mxu0
  %1260 = vmatprep.mubr.bf16.mxu0 0
  %1261 = vmatmul.mubr.bf16.gmra.mxu0 %v1190
  %v1262 = vpop.f32.mrf.mxu0
  %v1263 = vadd.f32 %v1166, %v1262
  %v1264 = vpop.f32.mrf.mxu0
  %v1265 = vpop.f32.mrf.mxu0
  %v1266 = vadd.f32 %v1166, %v1265
  %v1267 = vpop.f32.mrf.mxu0
  %1268 = vmatprep.mubr.bf16.mxu0 0
  %1269 = vmatmul.mubr.bf16.gmra.mxu0 %v1193
  %v1270 = vpop.f32.mrf.mxu0
  %v1271 = vadd.f32 %v1166, %v1270
  %v1272 = vpop.f32.mrf.mxu0
  %v1273 = vpop.f32.mrf.mxu0
  %v1274 = vadd.f32 %v1166, %v1273
  %v1275 = vpop.f32.mrf.mxu0
  %1276 = vmatprep.mubr.bf16.mxu0 0
  %1277 = vmatmul.mubr.bf16.gmra.mxu0 %v1196
  %v1278 = vpop.f32.mrf.mxu0
  %v1279 = vadd.f32 %v1166, %v1278
  %v1280 = vpop.f32.mrf.mxu0
  %v1281 = vpop.f32.mrf.mxu0
  %v1282 = vadd.f32 %v1166, %v1281
  %v1283 = vpop.f32.mrf.mxu0
  %1284 = vmatprep.mubr.bf16.mxu0 0
  %1285 = vmatmul.mubr.bf16.gmra.mxu0 %v1199
  %v1286 = vpop.f32.mrf.mxu0
  %v1287 = vadd.f32 %v1166, %v1286
  %v1288 = vpop.f32.mrf.mxu0
  %v1289 = vpop.f32.mrf.mxu0
  %v1290 = vadd.f32 %v1166, %v1289
  %v1291 = vpop.f32.mrf.mxu0
  %1292 = vmatprep.mubr.bf16.mxu0 0
  %1293 = vmatmul.mubr.bf16.gmra.mxu0 %v1202
  %v1294 = vpop.f32.mrf.mxu0
  %v1295 = vadd.f32 %v1166, %v1294
  %v1296 = vpop.f32.mrf.mxu0
  %v1297 = vpop.f32.mrf.mxu0
  %v1298 = vadd.f32 %v1166, %v1297
  %v1299 = vpop.f32.mrf.mxu0
  %1300 = vdwg.mxu0
  %1302 = vrot.lane.b32.xlu0 %v1242, 1
  %v1303 = vpop.permute.xlu0 %1302
  %1306 = vrot.lane.b32.xlu0 %v1247, 2
  %v1307 = vpop.permute.xlu0 %1306
  %1310 = vrot.lane.b32.xlu0 %v1250, 3
  %v1311 = vpop.permute.xlu0 %1310
  %1314 = vrot.lane.b32.xlu0 %v1255, 4
  %v1315 = vpop.permute.xlu0 %1314
  %1318 = vrot.lane.b32.xlu0 %v1258, 5
  %v1319 = vpop.permute.xlu0 %1318
  %1322 = vrot.lane.b32.xlu0 %v1263, 6
  %v1323 = vpop.permute.xlu0 %1322
  %1326 = vrot.lane.b32.xlu0 %v1266, 7
  %v1327 = vpop.permute.xlu0 %1326
  %1330 = vrot.lane.b32.xlu0 %v1271, 8
  %v1331 = vpop.permute.xlu0 %1330
  %1334 = vrot.lane.b32.xlu0 %v1274, 9
  %v1335 = vpop.permute.xlu0 %1334
  %1338 = vrot.lane.b32.xlu0 %v1279, 10
  %v1339 = vpop.permute.xlu0 %1338
  %1342 = vrot.lane.b32.xlu0 %v1282, 11
  %v1343 = vpop.permute.xlu0 %1342
  %1346 = vrot.lane.b32.xlu0 %v1287, 12
  %v1347 = vpop.permute.xlu0 %1346
  %1350 = vrot.lane.b32.xlu0 %v1290, 13
  %v1351 = vpop.permute.xlu0 %1350
  %1354 = vrot.lane.b32.xlu0 %v1295, 14
  %v1355 = vpop.permute.xlu0 %1354
  %1358 = vrot.lane.b32.xlu0 %v1298, 15
  %v1359 = vpop.permute.xlu0 %1358
  %v1361 = vsel %vm81, %v1239, %v1303
  %vm1362 = vcmask 15360
  %v1363 = vsel %vm1362, %v1361, %v1307
  %vm1364 = vcmask 23552
  %v1365 = vsel %vm1364, %v1363, %v1311
  %v1366 = vsel %vm119, %v1365, %v1315
  %vm1367 = vcmask 39936
  %v1368 = vsel %vm1367, %v1366, %v1319
  %vm1369 = vcmask 48128
  %v1370 = vsel %vm1369, %v1368, %v1323
  %vm1371 = vcmask 56320
  %v1372 = vsel %vm1371, %v1370, %v1327
  %v1373 = vsel %vm254, %v1372, %v1331
  %vm1374 = vcmask 72704
  %v1375 = vsel %vm1374, %v1373, %v1335
  %vm1376 = vcmask 80896
  %v1377 = vsel %vm1376, %v1375, %v1339
  %vm1378 = vcmask 89088
  %v1379 = vsel %vm1378, %v1377, %v1343
  %vm1380 = vcmask 97280
  %v1381 = vsel %vm1380, %v1379, %v1347
  %vm1382 = vcmask 105472
  %v1383 = vsel %vm1382, %v1381, %v1351
  %vm1384 = vcmask 113664
  %v1385 = vsel %vm1384, %v1383, %v1355
  %vm1386 = vcmask 121856
  %v1387 = vsel %vm1386, %v1385, %v1359
  %1388 = vst.msk [vmem:[%s22] sm:$0xff] %vm259, %v1387
  // Predicated region
  $region90: #{fwd.1} parent=0 // pred_check
    _
  $region91: #{fwd.1} parent=0 // pred_check_branch
    %1390 = sbr.rel (0) target = $region93
  $region92: #{fwd.1} parent=0 // pred_region
    _
  $region93: #{fwd.1} parent=0 // pred_fallthru
    _
  // Predicated region
  $region94: #{fwd.1} parent=0 // pred_check
    _
  $region95: #{fwd.1} parent=0 // pred_check_branch
    %1392 = sbr.rel (0) target = $region97
  $region96: #{fwd.1} parent=0 // pred_region
    _
  $region97: #{fwd.1} parent=0 // pred_fallthru
    _
  // Predicated region
  $region98: #{fwd.1} parent=0 // pred_check
    _
  $region99: #{fwd.1} parent=0 // pred_check_branch
    %1394 = sbr.rel (0) target = $region101
  $region100: #{fwd.1} parent=0 // pred_region
    _
  $region101: #{fwd.1} parent=0 // pred_fallthru
    _
  // Predicated region
  $region102: #{fwd.1} parent=0 // pred_check
    _
  $region103: #{fwd.1} parent=0 // pred_check_branch
    %1396 = sbr.rel (0) target = $region105
  $region104: #{fwd.1} parent=0 // pred_region
    _
  $region105: #{fwd.1} parent=0 // pred_fallthru
    _

</llo_original>
